<compile_context>
chip_gen: v6e
topology: v6e:2x2x1
jax: 0.10.0
libtpu: 0.0.40
codegen_flags: <defaults>
</compile_context>

<pallas_src>
import functools

import jax
import jax.numpy as jnp
import numpy as np
from jax.experimental import pallas as pl
from jax.experimental.pallas import tpu as pltpu


# -----------------------------------------------------------------------------
# Fused kernel
# -----------------------------------------------------------------------------
def _fused_ranker_kernel(T, B, Ns, gn, H,
                         xslab_ref, wslab_ref, tcslab_ref,
                         out_ref, xsel_ref):
    H2 = H // 2
    HC = 2 * H                     # combined hidden width: [q fwd|bwd | g fwd|bwd]
    GC = 4 * HC                    # combined gate width:   [i | f | o | g] type blocks
    f32, bf16 = jnp.float32, jnp.bfloat16

    # ---- static views of the packed input slabs ------------------------------
    x2d = xslab_ref[0:T * B, :]                            # (T*B, HC) time-major
    pos_tgt = xslab_ref[T * B:T * B + B, :]                # (B, HC) capture step / lane (f32)
    w_ih = wslab_ref[0:HC, :].astype(bf16)                 # (HC, GC) block-diagonal
    w_hh = wslab_ref[HC:2 * HC, :].astype(bf16)            # (HC, GC) block-diagonal
    bias = wslab_ref[2 * HC:2 * HC + 1, :]                 # (1, GC)  f32

    # ---- merged q+g BiLSTM: hoisted input projection (one MXU call for all T) -
    xproj = jnp.dot(x2d.astype(bf16), w_ih,
                    preferred_element_type=f32) + bias     # (T*B, GC)

    # fwd/bwd select hoisted OUT of the recurrence: within every gate-type block
    # the lane layout is [fwd_q | bwd_q | fwd_g | bwd_g]; fwd lanes consume time
    # step s, bwd lanes step T-1-s.  Built once into a VMEM scratch.
    gate_lane = jax.lax.broadcasted_iota(jnp.int32, (1, GC), 1)
    fwd_gate_lane = (gate_lane % H) < H2
    for s in range(T):
        xsel_ref[s * B:(s + 1) * B, :] = jnp.where(
            fwd_gate_lane,
            xproj[s * B:(s + 1) * B, :],
            xproj[(T - 1 - s) * B:(T - s) * B, :])

    # ---- T-step serialized recurrence (statically unrolled, T small & fixed) --
    h = jnp.zeros((B, HC), f32)
    c = jnp.zeros((B, HC), f32)
    pooled = jnp.zeros((B, HC), f32)
    for s in range(T):
        gates = xsel_ref[s * B:(s + 1) * B, :] + jnp.dot(
            h.astype(bf16), w_hh, preferred_element_type=f32)         # (B, GC)
        act = jax.nn.sigmoid(gates[:, 0:3 * HC])         # [i|f|o] only: no wasted EUP on g
        i_g = act[:, 0:HC]
        f_g = act[:, HC:2 * HC]
        o_g = act[:, 2 * HC:3 * HC]
        g_g = jnp.tanh(gates[:, 3 * HC:4 * HC])
        c = f_g * c + i_g * g_g
        h = o_g * jnp.tanh(c)
        pooled = jnp.where(pos_tgt == s, h, pooled)       # SimplePooler capture (off h-chain)

    # ---- pooled vectors: q block = lanes [0:H], g block = lanes [H:2H] --------
    q_vec = pooled[Ns:Ns + 1, 0:H]                        # (1, H)
    sub_vec = pooled[0:gn, H:2 * H]                       # (gn, H)
    ans_vec = pooled[gn:2 * gn, H:2 * H]                  # (gn, H)   -> self.answer

    # ---- topic_controller LSTMCell (dropout == identity in eval) --------------
    tc_wih = tcslab_ref[0:H, :].astype(bf16)              # (H, 4H)
    tc_bias = tcslab_ref[H:H + 1, :]                      # h0 @ W_hh + b   (host-folded)
    c0 = tcslab_ref[H + 1:H + 2, 0:H]                     # (1, H)
    gts = jnp.dot(q_vec.astype(bf16), tc_wih, preferred_element_type=f32) + tc_bias
    act2 = jax.nn.sigmoid(gts)                            # PyTorch (i, f, g, o) order
    i2 = act2[:, 0:H]
    f2 = act2[:, H:2 * H]
    o2 = act2[:, 3 * H:4 * H]
    g2 = jnp.tanh(gts[:, 2 * H:3 * H])
    c_new = f2 * c0 + i2 * g2
    h_new = o2 * jnp.tanh(c_new)

    # ---- sequence_sim = bmm(subgraph_vec, h^T); decoder Linear(2,1) -----------
    sim = jax.lax.dot_general(h_new.astype(bf16), sub_vec.astype(bf16),
                              (((1,), (1,)), ((), ())),
                              preferred_element_type=f32)             # (1, gn)
    ts_fold = tcslab_ref[H + 2:H + 3, 0:gn]               # ts*W[0,0] + b   (host-folded)
    dec_w1 = tcslab_ref[H + 3:H + 4, 0:gn]                # W[0,1] broadcast over gn lanes
    logits = ts_fold + sim * dec_w1

    # ---- single lane-dense output slab (sliced apart in the wrapper) ----------
    out_ref[...] = jnp.zeros_like(out_ref)
    out_ref[0:1, 0:gn] = logits
    out_ref[1:2, 0:H] = h_new
    out_ref[2:3, 0:H] = c_new
    out_ref[4:4 + gn, 0:H] = ans_vec


# -----------------------------------------------------------------------------
# Host-side packing: two bidirectional LSTMs -> one block-diagonal, type-major
# [i | f | o | g] combined weight set.
#   hidden layout (HC = 2H lanes): [h_fwd_q | h_bwd_q | h_fwd_g | h_bwd_g]
#   gate layout   (GC = 4*HC):     per type (i, f, o, g): [fwd_q|bwd_q|fwd_g|bwd_g]
# -----------------------------------------------------------------------------
def _pack_bilstm_combined(q_params, g_params, H):
    H2 = H // 2
    HC = 2 * H

    def typ_cols(m):   # PyTorch gate order (i, f, g, o) -> ours (i, f, o, g)
        return (m[..., 0:H2], m[..., H2:2 * H2], m[..., 3 * H2:4 * H2], m[..., 2 * H2:3 * H2])

    encs = (q_params, g_params)
    wih_cols, whh_cols, b_cols = [], [], []
    for t in range(4):                                    # gate type i, f, o, g
        for e in range(2):                                # encoder: 0 = q, 1 = g
            wf, hf, bf, wb, hb, bb = encs[e]
            for d, (wi, wh, b) in enumerate(((wf, hf, bf), (wb, hb, bb))):   # fwd, bwd
                col_ih = (jnp.zeros((HC, H2), jnp.float32)
                          .at[e * H:(e + 1) * H, :].set(typ_cols(wi)[t]))
                r0 = e * H + d * H2
                col_hh = (jnp.zeros((HC, H2), jnp.float32)
                          .at[r0:r0 + H2, :].set(typ_cols(wh)[t]))
                wih_cols.append(col_ih)
                whh_cols.append(col_hh)
                b_cols.append(typ_cols(b)[t])
    return (jnp.concatenate(wih_cols, axis=1),            # (2H, 8H)
            jnp.concatenate(whh_cols, axis=1),             # (2H, 8H)
            jnp.concatenate(b_cols, axis=1))               # (1, 8H)


# -----------------------------------------------------------------------------
# Parameter init (deterministic, synthetic).  Weights stored pre-transposed as
# (in_features, out_features); gate order is PyTorch (i, f, g, o).
# -----------------------------------------------------------------------------
def init_params(key, vocab, H):
    H2 = H // 2
    keys = jax.random.split(key, 20)
    scale = 0.1

    def rn(k, shape):
        return jax.random.normal(k, shape, jnp.float32) * scale

    return {
        "embedding": rn(keys[0], (vocab, H)),
        # nn.LSTM(H, H//2, bidirectional=True): per direction w_ih (H,4*H2),
        # w_hh (H2,4*H2), combined bias (1,4*H2)  [b_ih + b_hh folded]
        "q_lstm": (rn(keys[1], (H, 4 * H2)), rn(keys[2], (H2, 4 * H2)), rn(keys[3], (1, 4 * H2)),
                   rn(keys[4], (H, 4 * H2)), rn(keys[5], (H2, 4 * H2)), rn(keys[6], (1, 4 * H2))),
        "g_lstm": (rn(keys[7], (H, 4 * H2)), rn(keys[8], (H2, 4 * H2)), rn(keys[9], (1, 4 * H2)),
                   rn(keys[10], (H, 4 * H2)), rn(keys[11], (H2, 4 * H2)), rn(keys[12], (1, 4 * H2))),
        # nn.LSTMCell(H, H)
        "topic_cell": (rn(keys[13], (H, 4 * H)), rn(keys[14], (H, 4 * H)), rn(keys[15], (1, 4 * H))),
        # nn.Linear(2, 1): logits = ts*W[0,0] + sim*W[0,1] + b
        "decoder": (rn(keys[16], (1, 2)), rn(keys[17], (1, 1))),
        # self.start_hidden = (randn(1,H), randn(1,H))
        "start_hidden": (rn(keys[18], (1, H)), rn(keys[19], (1, H))),
    }


# -----------------------------------------------------------------------------
# Forward pass (non-BERT path).  nn.Module state (self.hidden / self.answer) is
# returned functionally.
# -----------------------------------------------------------------------------
def simple_recurrent_ranker_forward(params, question, subgraph, ts_score, answer, time=0):
    if time <= -1:
        # TODO(synk): time <= -1 path (reuse previous hidden without LSTMCell update).
        raise NotImplementedError("only the time > -1 path is implemented")

    HIGH = jax.lax.Precision.HIGHEST
    padding_id = 0
    _, _, sl = question.shape
    gn = subgraph.shape[1]
    Ns = 2 * gn
    emb = params["embedding"]
    H = emb.shape[1]
    H2 = H // 2
    HC = 2 * H
    GC = 4 * HC
    B_comb = ((Ns + 1 + 7) // 8) * 8          # Ns seq rows + 1 q row, sublane-padded (=16)

    q_tokens = question[:, 0, :]                                    # question[:, :1, :]
    seq_tokens = jnp.concatenate([subgraph, answer], axis=1)[0]     # (Ns, sl)

    # SimplePooler index: last non-padding position (clamped for all-pad rows).
    qidx = jnp.maximum(jnp.sum((q_tokens != padding_id).astype(jnp.int32), axis=1) - 1, 0)
    cidx = jnp.maximum(jnp.sum((seq_tokens != padding_id).astype(jnp.int32), axis=1) - 1, 0)

    # TODO(synk): embedding gather kept in XLA (tiny 50x32 table); everything
    # downstream runs inside ONE fused Pallas call.
    q_emb = emb[q_tokens[0]]                                        # (sl, H)
    seq_emb = jnp.transpose(emb[seq_tokens], (1, 0, 2))             # (sl, Ns, H) time-major

    # ---- input slab 1: combined activations + per-row pooling targets --------
    x_comb = jnp.zeros((sl, B_comb, HC), jnp.float32)
    x_comb = x_comb.at[:, 0:Ns, H:HC].set(seq_emb)      # g rows -> feature block [H:2H]
    x_comb = x_comb.at[:, Ns, 0:H].set(q_emb)           # q row  -> feature block [0:H]
    idx_all = (jnp.zeros((B_comb,), jnp.int32).at[0:Ns].set(cidx).at[Ns].set(qidx[0]))
    lane = jnp.arange(HC)
    fwd_lane = (lane % H) < H2
    pos_tgt = jnp.where(fwd_lane[None, :], idx_all[:, None],
                        sl - 1 - idx_all[:, None]).astype(jnp.float32)
    xslab = jnp.concatenate([x_comb.reshape(sl * B_comb, HC), pos_tgt], axis=0)

    # ---- input slab 2: merged block-diagonal BiLSTM weights -------------------
    wih_c, whh_c, bias_c = _pack_bilstm_combined(params["q_lstm"], params["g_lstm"], H)
    w_rows = ((2 * HC + 1 + 7) // 8) * 8
    wslab = (jnp.zeros((w_rows, GC), jnp.float32)
             .at[0:HC].set(wih_c).at[HC:2 * HC].set(whh_c).at[2 * HC].set(bias_c[0]))

    # ---- input slab 3: topic-cell / decoder constants (host-folded) -----------
    tc_wih, tc_whh, tc_b = params["topic_cell"]
    h0, c0 = params["start_hidden"]
    dec_w, dec_b = params["decoder"]
    tc_bias_eff = jnp.dot(h0, tc_whh, precision=HIGH) + tc_b        # h0 @ W_hh + b (constant)
    ts_fold = ts_score[:, :gn].astype(jnp.float32) * dec_w[0, 0] + dec_b[0, 0]
    tc_rows = ((H + 4 + 7) // 8) * 8
    tcslab = (jnp.zeros((tc_rows, 4 * H), jnp.float32)
              .at[0:H].set(tc_wih)
              .at[H].set(tc_bias_eff[0])
              .at[H + 1, 0:H].set(c0[0])
              .at[H + 2, 0:gn].set(ts_fold[0])
              .at[H + 3, 0:gn].set(jnp.full((gn,), dec_w[0, 1], jnp.float32)))

    out_rows = ((4 + gn + 7) // 8) * 8           # lane-dense output slab (128 lanes)
    vmem = functools.partial(pl.BlockSpec, memory_space=pltpu.MemorySpace.VMEM)
    kernel = functools.partial(_fused_ranker_kernel, sl, B_comb, Ns, gn, H)
    # TODO(synk): at production sizes add a "parallel" grid over the sequence
    # rows (2 TCs on v7x) and re-derive tiles for v7x's 64 MiB VMEM.
    out_slab = pl.pallas_call(
        kernel,
        out_shape=jax.ShapeDtypeStruct((out_rows, 128), jnp.float32),
        in_specs=[vmem(), vmem(), vmem()],
        out_specs=vmem(),
        scratch_shapes=[pltpu.VMEM((sl * B_comb, GC), jnp.float32)],
    )(xslab, wslab, tcslab)

    logits = out_slab[0:1, 0:gn]
    h_new = out_slab[1:2, 0:H]
    c_new = out_slab[2:3, 0:H]
    ans_vec = out_slab[4:4 + gn, 0:H]

    new_hidden = (h_new, c_new)      # appended to self.hidden in the PyTorch module
    return (logits, 0), new_hidden, ans_vec


# -----------------------------------------------------------------------------
# Pure-JAX reference (naive per-direction BiLSTM) for the correctness check.
# -----------------------------------------------------------------------------
def _reference_forward(params, question, subgraph, ts_score, answer):
    HIGH = jax.lax.Precision.HIGHEST
    pad = 0
    gn = subgraph.shape[1]
    q_tokens = question[:, 0, :]
    seq_tokens = jnp.concatenate([subgraph, answer], axis=1)[0]
    qidx = jnp.maximum(jnp.sum((q_tokens != pad).astype(jnp.int32), axis=1) - 1, 0)
    cidx = jnp.maximum(jnp.sum((seq_tokens != pad).astype(jnp.int32), axis=1) - 1, 0)
    emb = params["embedding"]
    q_emb = emb[q_tokens]            # (1, T, H)
    s_emb = emb[seq_tokens]          # (2gn, T, H)

    def lstm_dir(x, w_ih, w_hh, b, reverse):
        B, T, _ = x.shape
        H2 = w_hh.shape[0]
        h = jnp.zeros((B, H2), jnp.float32)
        c = jnp.zeros((B, H2), jnp.float32)
        outs = [None] * T
        order = range(T - 1, -1, -1) if reverse else range(T)
        for t in order:
            g = (jnp.dot(x[:, t], w_ih, precision=HIGH)
                 + jnp.dot(h, w_hh, precision=HIGH) + b)
            i = jax.nn.sigmoid(g[:, :H2])
            f = jax.nn.sigmoid(g[:, H2:2 * H2])
            gg = jnp.tanh(g[:, 2 * H2:3 * H2])
            o = jax.nn.sigmoid(g[:, 3 * H2:])
            c = f * c + i * gg
            h = o * jnp.tanh(c)
            outs[t] = h
        return jnp.stack(outs, axis=1)

    def bilstm(x, p):
        wf, whf, bf, wb, whb, bb = p
        return jnp.concatenate([lstm_dir(x, wf, whf, bf, False),
                                lstm_dir(x, wb, whb, bb, True)], axis=-1)

    q_enc = bilstm(q_emb, params["q_lstm"])
    s_enc = bilstm(s_emb, params["g_lstm"])
    q_vec = q_enc[jnp.arange(1), qidx]
    sub_vec = s_enc[jnp.arange(gn), cidx[:gn]]
    ans_vec = s_enc[gn + jnp.arange(gn), cidx[gn:]]

    w_ih, w_hh, b = params["topic_cell"]
    h0, c0 = params["start_hidden"]
    H = h0.shape[1]
    g = (jnp.dot(q_vec, w_ih, precision=HIGH)
         + jnp.dot(h0, w_hh, precision=HIGH) + b)
    i = jax.nn.sigmoid(g[:, :H])
    f = jax.nn.sigmoid(g[:, H:2 * H])
    gg = jnp.tanh(g[:, 2 * H:3 * H])
    o = jax.nn.sigmoid(g[:, 3 * H:])
    c_new = f * c0 + i * gg
    h_new = o * jnp.tanh(c_new)

    sim = jnp.dot(sub_vec, h_new.T, precision=HIGH)[:, 0]          # (gn,)
    dec_w, dec_b = params["decoder"]
    logits = ts_score[:, :gn] * dec_w[0, 0] + sim[None, :] * dec_w[0, 1] + dec_b[0, 0]
    return logits, h_new, c_new, ans_vec


# -----------------------------------------------------------------------------
if __name__ == "__main__":
    H, sl, gn, vocab = 32, 8, 4, 50

    key = jax.random.PRNGKey(0)
    kq, ks, ka, kt = jax.random.split(key, 4)

    def make_tokens(k, n, valid_lens):
        toks = jax.random.randint(k, (n, sl), 1, vocab, dtype=jnp.int32)
        mask = jnp.arange(sl)[None, :] < jnp.asarray(valid_lens)[:, None]
        return jnp.where(mask, toks, 0)

    question = make_tokens(kq, 2, [6, 5])[None]                     # (1, 2, sl)
    subgraph = make_tokens(ks, gn, [5, 7, 4, 8])[None]              # (1, gn, sl)
    answer = make_tokens(ka, gn, [3, 6, 8, 5])[None]                # (1, gn, sl)
    ts_score = jax.random.uniform(kt, (1, gn), dtype=jnp.float32)   # (1, gn)

    params = init_params(jax.random.PRNGKey(42), vocab, H)

    fwd = jax.jit(simple_recurrent_ranker_forward, static_argnames=("time",))
    (logits, aux0), (h_new, c_new), answer_vec = fwd(
        params, question, subgraph, ts_score, answer, time=0)
    jax.block_until_ready((logits, h_new, c_new, answer_vec))

    assert logits.shape == (1, gn)
    assert h_new.shape == (1, H) and c_new.shape == (1, H)
    assert answer_vec.shape == (gn, H)

    # Correctness check against a naive pure-JAX reference (HIGHEST precision).
    ref_logits, ref_h, ref_c, ref_ans = _reference_forward(
        params, question, subgraph, ts_score, answer)
    np.testing.assert_allclose(np.asarray(logits), np.asarray(ref_logits), rtol=2e-2, atol=5e-3)
    np.testing.assert_allclose(np.asarray(h_new), np.asarray(ref_h), rtol=2e-2, atol=5e-3)
    np.testing.assert_allclose(np.asarray(c_new), np.asarray(ref_c), rtol=2e-2, atol=5e-3)
    np.testing.assert_allclose(np.asarray(answer_vec), np.asarray(ref_ans), rtol=2e-2, atol=5e-3)

    print("KERNEL_OK")
</pallas_src>

<mosaic_0001>
module attributes {stable_mosaic.version = 11 : i64} {
  func.func @_fused_ranker_kernel(%arg0: memref<144x64xf32, #tpu.memory_space<vmem>>, %arg1: memref<136x256xf32, #tpu.memory_space<vmem>>, %arg2: memref<40x128xf32, #tpu.memory_space<vmem>>, %arg3: memref<8x128xf32, #tpu.memory_space<vmem>>, %arg4: memref<128x256xf32, #tpu.memory_space<vmem>>) attributes {dimension_semantics = [], scalar_prefetch = 0 : i64, scratch_operands = 1 : i64, tpu.core_type = #tpu.core_type<tc>} {
    %c0 = arith.constant 0 : index
    %c0_0 = arith.constant 0 : index
    %0 = vector.load %arg0[%c0, %c0_0] : memref<144x64xf32, #tpu.memory_space<vmem>>, vector<128x64xf32>
    %c128 = arith.constant 128 : index
    %c0_1 = arith.constant 0 : index
    %1 = vector.load %arg0[%c128, %c0_1] : memref<144x64xf32, #tpu.memory_space<vmem>>, vector<16x64xf32>
    %c0_2 = arith.constant 0 : index
    %c0_3 = arith.constant 0 : index
    %2 = vector.load %arg1[%c0_2, %c0_3] : memref<136x256xf32, #tpu.memory_space<vmem>>, vector<64x256xf32>
    %3 = arith.truncf %2 : vector<64x256xf32> to vector<64x256xbf16>
    %c64 = arith.constant 64 : index
    %c0_4 = arith.constant 0 : index
    %4 = vector.load %arg1[%c64, %c0_4] : memref<136x256xf32, #tpu.memory_space<vmem>>, vector<64x256xf32>
    %5 = arith.truncf %4 : vector<64x256xf32> to vector<64x256xbf16>
    %c128_5 = arith.constant 128 : index
    %c0_6 = arith.constant 0 : index
    %6 = vector.load %arg1[%c128_5, %c0_6] : memref<136x256xf32, #tpu.memory_space<vmem>>, vector<1x256xf32>
    %7 = arith.truncf %0 : vector<128x64xf32> to vector<128x64xbf16>
    %cst = arith.constant dense<0.000000e+00> : vector<128x256xf32>
    %8 = tpu.matmul %7, %3, %cst {dimension_numbers = #tpu.dot_dimension_numbers<[1], [0], [0], [1], [0, 0, 1, 1], [], []>} : vector<128x64xbf16>, vector<64x256xbf16>, vector<128x256xf32> -> vector<128x256xf32>
    %9 = vector.broadcast %6 : vector<1x256xf32> to vector<128x256xf32>
    %10 = arith.addf %8, %9 : vector<128x256xf32>
    %11 = tpu.iota {dimensions = array<i32: 1>} : vector<1x256xi32>
    %c32_i32 = arith.constant 32 : i32
    %c0_i32 = arith.constant 0 : i32
    %12 = arith.cmpi eq, %c32_i32, %c0_i32 : i32
    %c1_i32 = arith.constant 1 : i32
    %13 = arith.select %12, %c1_i32, %c32_i32 : i32
    %14 = vector.broadcast %13 : i32 to vector<1x256xi32>
    %15 = arith.remsi %11, %14 : vector<1x256xi32>
    %c0_i32_7 = arith.constant 0 : i32
    %16 = vector.broadcast %c0_i32_7 : i32 to vector<1x256xi32>
    %17 = arith.cmpi ne, %15, %16 : vector<1x256xi32>
    %c0_i32_8 = arith.constant 0 : i32
    %18 = vector.broadcast %c0_i32_8 : i32 to vector<1x256xi32>
    %19 = arith.cmpi slt, %15, %18 : vector<1x256xi32>
    %c0_i32_9 = arith.constant 0 : i32
    %20 = arith.cmpi slt, %13, %c0_i32_9 : i32
    %21 = vector.broadcast %20 : i1 to vector<1x256xi1>
    %22 = vector.broadcast %21 : vector<1x256xi1> to vector<1x256xi1>
    %23 = arith.xori %19, %22 : vector<1x256xi1>
    %24 = arith.andi %23, %17 : vector<1x256xi1>
    %25 = vector.broadcast %13 : i32 to vector<1x256xi32>
    %26 = arith.addi %15, %25 : vector<1x256xi32>
    %27 = arith.select %24, %26, %15 : vector<1x256xi1>, vector<1x256xi32>
    %c16_i32 = arith.constant 16 : i32
    %28 = vector.broadcast %c16_i32 : i32 to vector<1x256xi32>
    %29 = arith.cmpi slt, %27, %28 : vector<1x256xi32>
    %30 = vector.extract_strided_slice %10 {offsets = [0, 0], sizes = [16, 256], strides = [1, 1]} : vector<128x256xf32> to vector<16x256xf32>
    %31 = vector.extract_strided_slice %10 {offsets = [112, 0], sizes = [16, 256], strides = [1, 1]} : vector<128x256xf32> to vector<16x256xf32>
    %32 = vector.shape_cast %29 : vector<1x256xi1> to vector<1x256xi1>
    %33 = vector.broadcast %32 : vector<1x256xi1> to vector<16x256xi1>
    %34 = arith.select %33, %30, %31 : vector<16x256xi1>, vector<16x256xf32>
    %c0_10 = arith.constant 0 : index
    %c0_11 = arith.constant 0 : index
    %35 = vector.load %arg4[%c0_10, %c0_11] : memref<128x256xf32, #tpu.memory_space<vmem>>, vector<16x256xf32>
    tpu.vector_store %arg4[%c0_10, %c0_11], %34 {strides = array<i32>} : memref<128x256xf32, #tpu.memory_space<vmem>>, vector<16x256xf32>,
    %36 = vector.extract_strided_slice %10 {offsets = [16, 0], sizes = [16, 256], strides = [1, 1]} : vector<128x256xf32> to vector<16x256xf32>
    %37 = vector.extract_strided_slice %10 {offsets = [96, 0], sizes = [16, 256], strides = [1, 1]} : vector<128x256xf32> to vector<16x256xf32>
    %38 = vector.shape_cast %29 : vector<1x256xi1> to vector<1x256xi1>
    %39 = vector.broadcast %38 : vector<1x256xi1> to vector<16x256xi1>
    %40 = arith.select %39, %36, %37 : vector<16x256xi1>, vector<16x256xf32>
    %c16 = arith.constant 16 : index
    %c0_12 = arith.constant 0 : index
    %41 = vector.load %arg4[%c16, %c0_12] : memref<128x256xf32, #tpu.memory_space<vmem>>, vector<16x256xf32>
    tpu.vector_store %arg4[%c16, %c0_12], %40 {strides = array<i32>} : memref<128x256xf32, #tpu.memory_space<vmem>>, vector<16x256xf32>,
    %42 = vector.extract_strided_slice %10 {offsets = [32, 0], sizes = [16, 256], strides = [1, 1]} : vector<128x256xf32> to vector<16x256xf32>
    %43 = vector.extract_strided_slice %10 {offsets = [80, 0], sizes = [16, 256], strides = [1, 1]} : vector<128x256xf32> to vector<16x256xf32>
    %44 = vector.shape_cast %29 : vector<1x256xi1> to vector<1x256xi1>
    %45 = vector.broadcast %44 : vector<1x256xi1> to vector<16x256xi1>
    %46 = arith.select %45, %42, %43 : vector<16x256xi1>, vector<16x256xf32>
    %c32 = arith.constant 32 : index
    %c0_13 = arith.constant 0 : index
    %47 = vector.load %arg4[%c32, %c0_13] : memref<128x256xf32, #tpu.memory_space<vmem>>, vector<16x256xf32>
    tpu.vector_store %arg4[%c32, %c0_13], %46 {strides = array<i32>} : memref<128x256xf32, #tpu.memory_space<vmem>>, vector<16x256xf32>,
    %48 = vector.extract_strided_slice %10 {offsets = [48, 0], sizes = [16, 256], strides = [1, 1]} : vector<128x256xf32> to vector<16x256xf32>
    %49 = vector.extract_strided_slice %10 {offsets = [64, 0], sizes = [16, 256], strides = [1, 1]} : vector<128x256xf32> to vector<16x256xf32>
    %50 = vector.shape_cast %29 : vector<1x256xi1> to vector<1x256xi1>
    %51 = vector.broadcast %50 : vector<1x256xi1> to vector<16x256xi1>
    %52 = arith.select %51, %48, %49 : vector<16x256xi1>, vector<16x256xf32>
    %c48 = arith.constant 48 : index
    %c0_14 = arith.constant 0 : index
    %53 = vector.load %arg4[%c48, %c0_14] : memref<128x256xf32, #tpu.memory_space<vmem>>, vector<16x256xf32>
    tpu.vector_store %arg4[%c48, %c0_14], %52 {strides = array<i32>} : memref<128x256xf32, #tpu.memory_space<vmem>>, vector<16x256xf32>,
    %54 = vector.extract_strided_slice %10 {offsets = [64, 0], sizes = [16, 256], strides = [1, 1]} : vector<128x256xf32> to vector<16x256xf32>
    %55 = vector.extract_strided_slice %10 {offsets = [48, 0], sizes = [16, 256], strides = [1, 1]} : vector<128x256xf32> to vector<16x256xf32>
    %56 = vector.shape_cast %29 : vector<1x256xi1> to vector<1x256xi1>
    %57 = vector.broadcast %56 : vector<1x256xi1> to vector<16x256xi1>
    %58 = arith.select %57, %54, %55 : vector<16x256xi1>, vector<16x256xf32>
    %c64_15 = arith.constant 64 : index
    %c0_16 = arith.constant 0 : index
    %59 = vector.load %arg4[%c64_15, %c0_16] : memref<128x256xf32, #tpu.memory_space<vmem>>, vector<16x256xf32>
    tpu.vector_store %arg4[%c64_15, %c0_16], %58 {strides = array<i32>} : memref<128x256xf32, #tpu.memory_space<vmem>>, vector<16x256xf32>,
    %60 = vector.extract_strided_slice %10 {offsets = [80, 0], sizes = [16, 256], strides = [1, 1]} : vector<128x256xf32> to vector<16x256xf32>
    %61 = vector.extract_strided_slice %10 {offsets = [32, 0], sizes = [16, 256], strides = [1, 1]} : vector<128x256xf32> to vector<16x256xf32>
    %62 = vector.shape_cast %29 : vector<1x256xi1> to vector<1x256xi1>
    %63 = vector.broadcast %62 : vector<1x256xi1> to vector<16x256xi1>
    %64 = arith.select %63, %60, %61 : vector<16x256xi1>, vector<16x256xf32>
    %c80 = arith.constant 80 : index
    %c0_17 = arith.constant 0 : index
    %65 = vector.load %arg4[%c80, %c0_17] : memref<128x256xf32, #tpu.memory_space<vmem>>, vector<16x256xf32>
    tpu.vector_store %arg4[%c80, %c0_17], %64 {strides = array<i32>} : memref<128x256xf32, #tpu.memory_space<vmem>>, vector<16x256xf32>,
    %66 = vector.extract_strided_slice %10 {offsets = [96, 0], sizes = [16, 256], strides = [1, 1]} : vector<128x256xf32> to vector<16x256xf32>
    %67 = vector.extract_strided_slice %10 {offsets = [16, 0], sizes = [16, 256], strides = [1, 1]} : vector<128x256xf32> to vector<16x256xf32>
    %68 = vector.shape_cast %29 : vector<1x256xi1> to vector<1x256xi1>
    %69 = vector.broadcast %68 : vector<1x256xi1> to vector<16x256xi1>
    %70 = arith.select %69, %66, %67 : vector<16x256xi1>, vector<16x256xf32>
    %c96 = arith.constant 96 : index
    %c0_18 = arith.constant 0 : index
    %71 = vector.load %arg4[%c96, %c0_18] : memref<128x256xf32, #tpu.memory_space<vmem>>, vector<16x256xf32>
    tpu.vector_store %arg4[%c96, %c0_18], %70 {strides = array<i32>} : memref<128x256xf32, #tpu.memory_space<vmem>>, vector<16x256xf32>,
    %72 = vector.extract_strided_slice %10 {offsets = [112, 0], sizes = [16, 256], strides = [1, 1]} : vector<128x256xf32> to vector<16x256xf32>
    %73 = vector.extract_strided_slice %10 {offsets = [0, 0], sizes = [16, 256], strides = [1, 1]} : vector<128x256xf32> to vector<16x256xf32>
    %74 = vector.shape_cast %29 : vector<1x256xi1> to vector<1x256xi1>
    %75 = vector.broadcast %74 : vector<1x256xi1> to vector<16x256xi1>
    %76 = arith.select %75, %72, %73 : vector<16x256xi1>, vector<16x256xf32>
    %c112 = arith.constant 112 : index
    %c0_19 = arith.constant 0 : index
    %77 = vector.load %arg4[%c112, %c0_19] : memref<128x256xf32, #tpu.memory_space<vmem>>, vector<16x256xf32>
    tpu.vector_store %arg4[%c112, %c0_19], %76 {strides = array<i32>} : memref<128x256xf32, #tpu.memory_space<vmem>>, vector<16x256xf32>,
    %cst_20 = arith.constant 0.000000e+00 : f32
    %78 = vector.broadcast %cst_20 : f32 to vector<16x64xf32>
    %cst_21 = arith.constant 0.000000e+00 : f32
    %79 = vector.broadcast %cst_21 : f32 to vector<16x64xf32>
    %cst_22 = arith.constant 0.000000e+00 : f32
    %80 = vector.broadcast %cst_22 : f32 to vector<16x64xf32>
    %c0_23 = arith.constant 0 : index
    %c0_24 = arith.constant 0 : index
    %81 = vector.load %arg4[%c0_23, %c0_24] : memref<128x256xf32, #tpu.memory_space<vmem>>, vector<16x256xf32>
    %82 = arith.truncf %78 : vector<16x64xf32> to vector<16x64xbf16>
    %cst_25 = arith.constant dense<0.000000e+00> : vector<16x256xf32>
    %83 = tpu.matmul %82, %5, %cst_25 {dimension_numbers = #tpu.dot_dimension_numbers<[1], [0], [0], [1], [0, 0, 1, 1], [], []>} : vector<16x64xbf16>, vector<64x256xbf16>, vector<16x256xf32> -> vector<16x256xf32>
    %84 = arith.addf %81, %83 : vector<16x256xf32>
    %85 = vector.extract_strided_slice %84 {offsets = [0, 0], sizes = [16, 192], strides = [1, 1]} : vector<16x256xf32> to vector<16x192xf32>
    %86 = arith.negf %85 : vector<16x192xf32>
    %87 = math.exp %86 : vector<16x192xf32>
    %cst_26 = arith.constant 1.000000e+00 : f32
    %88 = vector.broadcast %cst_26 : f32 to vector<16x192xf32>
    %89 = arith.addf %88, %87 : vector<16x192xf32>
    %90 = arith.divf %88, %89 : vector<16x192xf32>
    %91 = vector.extract_strided_slice %90 {offsets = [0, 0], sizes = [16, 64], strides = [1, 1]} : vector<16x192xf32> to vector<16x64xf32>
    %92 = vector.extract_strided_slice %90 {offsets = [0, 64], sizes = [16, 64], strides = [1, 1]} : vector<16x192xf32> to vector<16x64xf32>
    %93 = vector.extract_strided_slice %90 {offsets = [0, 128], sizes = [16, 64], strides = [1, 1]} : vector<16x192xf32> to vector<16x64xf32>
    %94 = vector.extract_strided_slice %84 {offsets = [0, 192], sizes = [16, 64], strides = [1, 1]} : vector<16x256xf32> to vector<16x64xf32>
    %95 = math.tanh %94 : vector<16x64xf32>
    %96 = arith.mulf %92, %79 : vector<16x64xf32>
    %97 = arith.mulf %91, %95 : vector<16x64xf32>
    %98 = arith.addf %96, %97 : vector<16x64xf32>
    %99 = math.tanh %98 : vector<16x64xf32>
    %100 = arith.mulf %93, %99 : vector<16x64xf32>
    %cst_27 = arith.constant 0.000000e+00 : f32
    %101 = vector.broadcast %cst_27 : f32 to vector<16x64xf32>
    %102 = arith.cmpf oeq, %1, %101 : vector<16x64xf32>
    %103 = arith.select %102, %100, %80 : vector<16x64xi1>, vector<16x64xf32>
    %c16_28 = arith.constant 16 : index
    %c0_29 = arith.constant 0 : index
    %104 = vector.load %arg4[%c16_28, %c0_29] : memref<128x256xf32, #tpu.memory_space<vmem>>, vector<16x256xf32>
    %105 = arith.truncf %100 : vector<16x64xf32> to vector<16x64xbf16>
    %cst_30 = arith.constant dense<0.000000e+00> : vector<16x256xf32>
    %106 = tpu.matmul %105, %5, %cst_30 {dimension_numbers = #tpu.dot_dimension_numbers<[1], [0], [0], [1], [0, 0, 1, 1], [], []>} : vector<16x64xbf16>, vector<64x256xbf16>, vector<16x256xf32> -> vector<16x256xf32>
    %107 = arith.addf %104, %106 : vector<16x256xf32>
    %108 = vector.extract_strided_slice %107 {offsets = [0, 0], sizes = [16, 192], strides = [1, 1]} : vector<16x256xf32> to vector<16x192xf32>
    %109 = arith.negf %108 : vector<16x192xf32>
    %110 = math.exp %109 : vector<16x192xf32>
    %cst_31 = arith.constant 1.000000e+00 : f32
    %111 = vector.broadcast %cst_31 : f32 to vector<16x192xf32>
    %112 = arith.addf %111, %110 : vector<16x192xf32>
    %113 = arith.divf %111, %112 : vector<16x192xf32>
    %114 = vector.extract_strided_slice %113 {offsets = [0, 0], sizes = [16, 64], strides = [1, 1]} : vector<16x192xf32> to vector<16x64xf32>
    %115 = vector.extract_strided_slice %113 {offsets = [0, 64], sizes = [16, 64], strides = [1, 1]} : vector<16x192xf32> to vector<16x64xf32>
    %116 = vector.extract_strided_slice %113 {offsets = [0, 128], sizes = [16, 64], strides = [1, 1]} : vector<16x192xf32> to vector<16x64xf32>
    %117 = vector.extract_strided_slice %107 {offsets = [0, 192], sizes = [16, 64], strides = [1, 1]} : vector<16x256xf32> to vector<16x64xf32>
    %118 = math.tanh %117 : vector<16x64xf32>
    %119 = arith.mulf %115, %98 : vector<16x64xf32>
    %120 = arith.mulf %114, %118 : vector<16x64xf32>
    %121 = arith.addf %119, %120 : vector<16x64xf32>
    %122 = math.tanh %121 : vector<16x64xf32>
    %123 = arith.mulf %116, %122 : vector<16x64xf32>
    %cst_32 = arith.constant 1.000000e+00 : f32
    %124 = vector.broadcast %cst_32 : f32 to vector<16x64xf32>
    %125 = arith.cmpf oeq, %1, %124 : vector<16x64xf32>
    %126 = arith.select %125, %123, %103 : vector<16x64xi1>, vector<16x64xf32>
    %c32_33 = arith.constant 32 : index
    %c0_34 = arith.constant 0 : index
    %127 = vector.load %arg4[%c32_33, %c0_34] : memref<128x256xf32, #tpu.memory_space<vmem>>, vector<16x256xf32>
    %128 = arith.truncf %123 : vector<16x64xf32> to vector<16x64xbf16>
    %cst_35 = arith.constant dense<0.000000e+00> : vector<16x256xf32>
    %129 = tpu.matmul %128, %5, %cst_35 {dimension_numbers = #tpu.dot_dimension_numbers<[1], [0], [0], [1], [0, 0, 1, 1], [], []>} : vector<16x64xbf16>, vector<64x256xbf16>, vector<16x256xf32> -> vector<16x256xf32>
    %130 = arith.addf %127, %129 : vector<16x256xf32>
    %131 = vector.extract_strided_slice %130 {offsets = [0, 0], sizes = [16, 192], strides = [1, 1]} : vector<16x256xf32> to vector<16x192xf32>
    %132 = arith.negf %131 : vector<16x192xf32>
    %133 = math.exp %132 : vector<16x192xf32>
    %cst_36 = arith.constant 1.000000e+00 : f32
    %134 = vector.broadcast %cst_36 : f32 to vector<16x192xf32>
    %135 = arith.addf %134, %133 : vector<16x192xf32>
    %136 = arith.divf %134, %135 : vector<16x192xf32>
    %137 = vector.extract_strided_slice %136 {offsets = [0, 0], sizes = [16, 64], strides = [1, 1]} : vector<16x192xf32> to vector<16x64xf32>
    %138 = vector.extract_strided_slice %136 {offsets = [0, 64], sizes = [16, 64], strides = [1, 1]} : vector<16x192xf32> to vector<16x64xf32>
    %139 = vector.extract_strided_slice %136 {offsets = [0, 128], sizes = [16, 64], strides = [1, 1]} : vector<16x192xf32> to vector<16x64xf32>
    %140 = vector.extract_strided_slice %130 {offsets = [0, 192], sizes = [16, 64], strides = [1, 1]} : vector<16x256xf32> to vector<16x64xf32>
    %141 = math.tanh %140 : vector<16x64xf32>
    %142 = arith.mulf %138, %121 : vector<16x64xf32>
    %143 = arith.mulf %137, %141 : vector<16x64xf32>
    %144 = arith.addf %142, %143 : vector<16x64xf32>
    %145 = math.tanh %144 : vector<16x64xf32>
    %146 = arith.mulf %139, %145 : vector<16x64xf32>
    %cst_37 = arith.constant 2.000000e+00 : f32
    %147 = vector.broadcast %cst_37 : f32 to vector<16x64xf32>
    %148 = arith.cmpf oeq, %1, %147 : vector<16x64xf32>
    %149 = arith.select %148, %146, %126 : vector<16x64xi1>, vector<16x64xf32>
    %c48_38 = arith.constant 48 : index
    %c0_39 = arith.constant 0 : index
    %150 = vector.load %arg4[%c48_38, %c0_39] : memref<128x256xf32, #tpu.memory_space<vmem>>, vector<16x256xf32>
    %151 = arith.truncf %146 : vector<16x64xf32> to vector<16x64xbf16>
    %cst_40 = arith.constant dense<0.000000e+00> : vector<16x256xf32>
    %152 = tpu.matmul %151, %5, %cst_40 {dimension_numbers = #tpu.dot_dimension_numbers<[1], [0], [0], [1], [0, 0, 1, 1], [], []>} : vector<16x64xbf16>, vector<64x256xbf16>, vector<16x256xf32> -> vector<16x256xf32>
    %153 = arith.addf %150, %152 : vector<16x256xf32>
    %154 = vector.extract_strided_slice %153 {offsets = [0, 0], sizes = [16, 192], strides = [1, 1]} : vector<16x256xf32> to vector<16x192xf32>
    %155 = arith.negf %154 : vector<16x192xf32>
    %156 = math.exp %155 : vector<16x192xf32>
    %cst_41 = arith.constant 1.000000e+00 : f32
    %157 = vector.broadcast %cst_41 : f32 to vector<16x192xf32>
    %158 = arith.addf %157, %156 : vector<16x192xf32>
    %159 = arith.divf %157, %158 : vector<16x192xf32>
    %160 = vector.extract_strided_slice %159 {offsets = [0, 0], sizes = [16, 64], strides = [1, 1]} : vector<16x192xf32> to vector<16x64xf32>
    %161 = vector.extract_strided_slice %159 {offsets = [0, 64], sizes = [16, 64], strides = [1, 1]} : vector<16x192xf32> to vector<16x64xf32>
    %162 = vector.extract_strided_slice %159 {offsets = [0, 128], sizes = [16, 64], strides = [1, 1]} : vector<16x192xf32> to vector<16x64xf32>
    %163 = vector.extract_strided_slice %153 {offsets = [0, 192], sizes = [16, 64], strides = [1, 1]} : vector<16x256xf32> to vector<16x64xf32>
    %164 = math.tanh %163 : vector<16x64xf32>
    %165 = arith.mulf %161, %144 : vector<16x64xf32>
    %166 = arith.mulf %160, %164 : vector<16x64xf32>
    %167 = arith.addf %165, %166 : vector<16x64xf32>
    %168 = math.tanh %167 : vector<16x64xf32>
    %169 = arith.mulf %162, %168 : vector<16x64xf32>
    %cst_42 = arith.constant 3.000000e+00 : f32
    %170 = vector.broadcast %cst_42 : f32 to vector<16x64xf32>
    %171 = arith.cmpf oeq, %1, %170 : vector<16x64xf32>
    %172 = arith.select %171, %169, %149 : vector<16x64xi1>, vector<16x64xf32>
    %c64_43 = arith.constant 64 : index
    %c0_44 = arith.constant 0 : index
    %173 = vector.load %arg4[%c64_43, %c0_44] : memref<128x256xf32, #tpu.memory_space<vmem>>, vector<16x256xf32>
    %174 = arith.truncf %169 : vector<16x64xf32> to vector<16x64xbf16>
    %cst_45 = arith.constant dense<0.000000e+00> : vector<16x256xf32>
    %175 = tpu.matmul %174, %5, %cst_45 {dimension_numbers = #tpu.dot_dimension_numbers<[1], [0], [0], [1], [0, 0, 1, 1], [], []>} : vector<16x64xbf16>, vector<64x256xbf16>, vector<16x256xf32> -> vector<16x256xf32>
    %176 = arith.addf %173, %175 : vector<16x256xf32>
    %177 = vector.extract_strided_slice %176 {offsets = [0, 0], sizes = [16, 192], strides = [1, 1]} : vector<16x256xf32> to vector<16x192xf32>
    %178 = arith.negf %177 : vector<16x192xf32>
    %179 = math.exp %178 : vector<16x192xf32>
    %cst_46 = arith.constant 1.000000e+00 : f32
    %180 = vector.broadcast %cst_46 : f32 to vector<16x192xf32>
    %181 = arith.addf %180, %179 : vector<16x192xf32>
    %182 = arith.divf %180, %181 : vector<16x192xf32>
    %183 = vector.extract_strided_slice %182 {offsets = [0, 0], sizes = [16, 64], strides = [1, 1]} : vector<16x192xf32> to vector<16x64xf32>
    %184 = vector.extract_strided_slice %182 {offsets = [0, 64], sizes = [16, 64], strides = [1, 1]} : vector<16x192xf32> to vector<16x64xf32>
    %185 = vector.extract_strided_slice %182 {offsets = [0, 128], sizes = [16, 64], strides = [1, 1]} : vector<16x192xf32> to vector<16x64xf32>
    %186 = vector.extract_strided_slice %176 {offsets = [0, 192], sizes = [16, 64], strides = [1, 1]} : vector<16x256xf32> to vector<16x64xf32>
    %187 = math.tanh %186 : vector<16x64xf32>
    %188 = arith.mulf %184, %167 : vector<16x64xf32>
    %189 = arith.mulf %183, %187 : vector<16x64xf32>
    %190 = arith.addf %188, %189 : vector<16x64xf32>
    %191 = math.tanh %190 : vector<16x64xf32>
    %192 = arith.mulf %185, %191 : vector<16x64xf32>
    %cst_47 = arith.constant 4.000000e+00 : f32
    %193 = vector.broadcast %cst_47 : f32 to vector<16x64xf32>
    %194 = arith.cmpf oeq, %1, %193 : vector<16x64xf32>
    %195 = arith.select %194, %192, %172 : vector<16x64xi1>, vector<16x64xf32>
    %c80_48 = arith.constant 80 : index
    %c0_49 = arith.constant 0 : index
    %196 = vector.load %arg4[%c80_48, %c0_49] : memref<128x256xf32, #tpu.memory_space<vmem>>, vector<16x256xf32>
    %197 = arith.truncf %192 : vector<16x64xf32> to vector<16x64xbf16>
    %cst_50 = arith.constant dense<0.000000e+00> : vector<16x256xf32>
    %198 = tpu.matmul %197, %5, %cst_50 {dimension_numbers = #tpu.dot_dimension_numbers<[1], [0], [0], [1], [0, 0, 1, 1], [], []>} : vector<16x64xbf16>, vector<64x256xbf16>, vector<16x256xf32> -> vector<16x256xf32>
    %199 = arith.addf %196, %198 : vector<16x256xf32>
    %200 = vector.extract_strided_slice %199 {offsets = [0, 0], sizes = [16, 192], strides = [1, 1]} : vector<16x256xf32> to vector<16x192xf32>
    %201 = arith.negf %200 : vector<16x192xf32>
    %202 = math.exp %201 : vector<16x192xf32>
    %cst_51 = arith.constant 1.000000e+00 : f32
    %203 = vector.broadcast %cst_51 : f32 to vector<16x192xf32>
    %204 = arith.addf %203, %202 : vector<16x192xf32>
    %205 = arith.divf %203, %204 : vector<16x192xf32>
    %206 = vector.extract_strided_slice %205 {offsets = [0, 0], sizes = [16, 64], strides = [1, 1]} : vector<16x192xf32> to vector<16x64xf32>
    %207 = vector.extract_strided_slice %205 {offsets = [0, 64], sizes = [16, 64], strides = [1, 1]} : vector<16x192xf32> to vector<16x64xf32>
    %208 = vector.extract_strided_slice %205 {offsets = [0, 128], sizes = [16, 64], strides = [1, 1]} : vector<16x192xf32> to vector<16x64xf32>
    %209 = vector.extract_strided_slice %199 {offsets = [0, 192], sizes = [16, 64], strides = [1, 1]} : vector<16x256xf32> to vector<16x64xf32>
    %210 = math.tanh %209 : vector<16x64xf32>
    %211 = arith.mulf %207, %190 : vector<16x64xf32>
    %212 = arith.mulf %206, %210 : vector<16x64xf32>
    %213 = arith.addf %211, %212 : vector<16x64xf32>
    %214 = math.tanh %213 : vector<16x64xf32>
    %215 = arith.mulf %208, %214 : vector<16x64xf32>
    %cst_52 = arith.constant 5.000000e+00 : f32
    %216 = vector.broadcast %cst_52 : f32 to vector<16x64xf32>
    %217 = arith.cmpf oeq, %1, %216 : vector<16x64xf32>
    %218 = arith.select %217, %215, %195 : vector<16x64xi1>, vector<16x64xf32>
    %c96_53 = arith.constant 96 : index
    %c0_54 = arith.constant 0 : index
    %219 = vector.load %arg4[%c96_53, %c0_54] : memref<128x256xf32, #tpu.memory_space<vmem>>, vector<16x256xf32>
    %220 = arith.truncf %215 : vector<16x64xf32> to vector<16x64xbf16>
    %cst_55 = arith.constant dense<0.000000e+00> : vector<16x256xf32>
    %221 = tpu.matmul %220, %5, %cst_55 {dimension_numbers = #tpu.dot_dimension_numbers<[1], [0], [0], [1], [0, 0, 1, 1], [], []>} : vector<16x64xbf16>, vector<64x256xbf16>, vector<16x256xf32> -> vector<16x256xf32>
    %222 = arith.addf %219, %221 : vector<16x256xf32>
    %223 = vector.extract_strided_slice %222 {offsets = [0, 0], sizes = [16, 192], strides = [1, 1]} : vector<16x256xf32> to vector<16x192xf32>
    %224 = arith.negf %223 : vector<16x192xf32>
    %225 = math.exp %224 : vector<16x192xf32>
    %cst_56 = arith.constant 1.000000e+00 : f32
    %226 = vector.broadcast %cst_56 : f32 to vector<16x192xf32>
    %227 = arith.addf %226, %225 : vector<16x192xf32>
    %228 = arith.divf %226, %227 : vector<16x192xf32>
    %229 = vector.extract_strided_slice %228 {offsets = [0, 0], sizes = [16, 64], strides = [1, 1]} : vector<16x192xf32> to vector<16x64xf32>
    %230 = vector.extract_strided_slice %228 {offsets = [0, 64], sizes = [16, 64], strides = [1, 1]} : vector<16x192xf32> to vector<16x64xf32>
    %231 = vector.extract_strided_slice %228 {offsets = [0, 128], sizes = [16, 64], strides = [1, 1]} : vector<16x192xf32> to vector<16x64xf32>
    %232 = vector.extract_strided_slice %222 {offsets = [0, 192], sizes = [16, 64], strides = [1, 1]} : vector<16x256xf32> to vector<16x64xf32>
    %233 = math.tanh %232 : vector<16x64xf32>
    %234 = arith.mulf %230, %213 : vector<16x64xf32>
    %235 = arith.mulf %229, %233 : vector<16x64xf32>
    %236 = arith.addf %234, %235 : vector<16x64xf32>
    %237 = math.tanh %236 : vector<16x64xf32>
    %238 = arith.mulf %231, %237 : vector<16x64xf32>
    %cst_57 = arith.constant 6.000000e+00 : f32
    %239 = vector.broadcast %cst_57 : f32 to vector<16x64xf32>
    %240 = arith.cmpf oeq, %1, %239 : vector<16x64xf32>
    %241 = arith.select %240, %238, %218 : vector<16x64xi1>, vector<16x64xf32>
    %c112_58 = arith.constant 112 : index
    %c0_59 = arith.constant 0 : index
    %242 = vector.load %arg4[%c112_58, %c0_59] : memref<128x256xf32, #tpu.memory_space<vmem>>, vector<16x256xf32>
    %243 = arith.truncf %238 : vector<16x64xf32> to vector<16x64xbf16>
    %cst_60 = arith.constant dense<0.000000e+00> : vector<16x256xf32>
    %244 = tpu.matmul %243, %5, %cst_60 {dimension_numbers = #tpu.dot_dimension_numbers<[1], [0], [0], [1], [0, 0, 1, 1], [], []>} : vector<16x64xbf16>, vector<64x256xbf16>, vector<16x256xf32> -> vector<16x256xf32>
    %245 = arith.addf %242, %244 : vector<16x256xf32>
    %246 = vector.extract_strided_slice %245 {offsets = [0, 0], sizes = [16, 192], strides = [1, 1]} : vector<16x256xf32> to vector<16x192xf32>
    %247 = arith.negf %246 : vector<16x192xf32>
    %248 = math.exp %247 : vector<16x192xf32>
    %cst_61 = arith.constant 1.000000e+00 : f32
    %249 = vector.broadcast %cst_61 : f32 to vector<16x192xf32>
    %250 = arith.addf %249, %248 : vector<16x192xf32>
    %251 = arith.divf %249, %250 : vector<16x192xf32>
    %252 = vector.extract_strided_slice %251 {offsets = [0, 0], sizes = [16, 64], strides = [1, 1]} : vector<16x192xf32> to vector<16x64xf32>
    %253 = vector.extract_strided_slice %251 {offsets = [0, 64], sizes = [16, 64], strides = [1, 1]} : vector<16x192xf32> to vector<16x64xf32>
    %254 = vector.extract_strided_slice %251 {offsets = [0, 128], sizes = [16, 64], strides = [1, 1]} : vector<16x192xf32> to vector<16x64xf32>
    %255 = vector.extract_strided_slice %245 {offsets = [0, 192], sizes = [16, 64], strides = [1, 1]} : vector<16x256xf32> to vector<16x64xf32>
    %256 = math.tanh %255 : vector<16x64xf32>
    %257 = arith.mulf %253, %236 : vector<16x64xf32>
    %258 = arith.mulf %252, %256 : vector<16x64xf32>
    %259 = arith.addf %257, %258 : vector<16x64xf32>
    %260 = math.tanh %259 : vector<16x64xf32>
    %261 = arith.mulf %254, %260 : vector<16x64xf32>
    %cst_62 = arith.constant 7.000000e+00 : f32
    %262 = vector.broadcast %cst_62 : f32 to vector<16x64xf32>
    %263 = arith.cmpf oeq, %1, %262 : vector<16x64xf32>
    %264 = arith.select %263, %261, %241 : vector<16x64xi1>, vector<16x64xf32>
    %265 = vector.extract_strided_slice %264 {offsets = [8, 0], sizes = [1, 32], strides = [1, 1]} : vector<16x64xf32> to vector<1x32xf32>
    %266 = vector.extract_strided_slice %264 {offsets = [0, 32], sizes = [4, 32], strides = [1, 1]} : vector<16x64xf32> to vector<4x32xf32>
    %267 = vector.extract_strided_slice %264 {offsets = [4, 32], sizes = [4, 32], strides = [1, 1]} : vector<16x64xf32> to vector<4x32xf32>
    %c0_63 = arith.constant 0 : index
    %c0_64 = arith.constant 0 : index
    %268 = vector.load %arg2[%c0_63, %c0_64] : memref<40x128xf32, #tpu.memory_space<vmem>>, vector<32x128xf32>
    %269 = arith.truncf %268 : vector<32x128xf32> to vector<32x128xbf16>
    %c32_65 = arith.constant 32 : index
    %c0_66 = arith.constant 0 : index
    %270 = vector.load %arg2[%c32_65, %c0_66] : memref<40x128xf32, #tpu.memory_space<vmem>>, vector<1x128xf32>
    %c33 = arith.constant 33 : index
    %c0_67 = arith.constant 0 : index
    %271 = vector.load %arg2[%c33, %c0_67] : memref<40x128xf32, #tpu.memory_space<vmem>>, vector<1x32xf32>
    %272 = arith.truncf %265 : vector<1x32xf32> to vector<1x32xbf16>
    %cst_68 = arith.constant dense<0.000000e+00> : vector<1x128xf32>
    %273 = tpu.matmul %272, %269, %cst_68 {dimension_numbers = #tpu.dot_dimension_numbers<[1], [0], [0], [1], [0, 0, 1, 1], [], []>} : vector<1x32xbf16>, vector<32x128xbf16>, vector<1x128xf32> -> vector<1x128xf32>
    %274 = arith.addf %273, %270 : vector<1x128xf32>
    %275 = arith.negf %274 : vector<1x128xf32>
    %276 = math.exp %275 : vector<1x128xf32>
    %cst_69 = arith.constant 1.000000e+00 : f32
    %277 = vector.broadcast %cst_69 : f32 to vector<1x128xf32>
    %278 = arith.addf %277, %276 : vector<1x128xf32>
    %279 = arith.divf %277, %278 : vector<1x128xf32>
    %280 = vector.extract_strided_slice %279 {offsets = [0, 0], sizes = [1, 32], strides = [1, 1]} : vector<1x128xf32> to vector<1x32xf32>
    %281 = vector.extract_strided_slice %279 {offsets = [0, 32], sizes = [1, 32], strides = [1, 1]} : vector<1x128xf32> to vector<1x32xf32>
    %282 = vector.extract_strided_slice %279 {offsets = [0, 96], sizes = [1, 32], strides = [1, 1]} : vector<1x128xf32> to vector<1x32xf32>
    %283 = vector.extract_strided_slice %274 {offsets = [0, 64], sizes = [1, 32], strides = [1, 1]} : vector<1x128xf32> to vector<1x32xf32>
    %284 = math.tanh %283 : vector<1x32xf32>
    %285 = arith.mulf %281, %271 : vector<1x32xf32>
    %286 = arith.mulf %280, %284 : vector<1x32xf32>
    %287 = arith.addf %285, %286 : vector<1x32xf32>
    %288 = math.tanh %287 : vector<1x32xf32>
    %289 = arith.mulf %282, %288 : vector<1x32xf32>
    %290 = arith.truncf %289 : vector<1x32xf32> to vector<1x32xbf16>
    %291 = arith.truncf %266 : vector<4x32xf32> to vector<4x32xbf16>
    %cst_70 = arith.constant dense<0.000000e+00> : vector<1x4xf32>
    %292 = tpu.matmul %290, %291, %cst_70 {dimension_numbers = #tpu.dot_dimension_numbers<[1], [1], [0], [0], [0, 0, 1, 0], [], []>} : vector<1x32xbf16>, vector<4x32xbf16>, vector<1x4xf32> -> vector<1x4xf32>
    %c34 = arith.constant 34 : index
    %c0_71 = arith.constant 0 : index
    %293 = vector.load %arg2[%c34, %c0_71] : memref<40x128xf32, #tpu.memory_space<vmem>>, vector<1x4xf32>
    %c35 = arith.constant 35 : index
    %c0_72 = arith.constant 0 : index
    %294 = vector.load %arg2[%c35, %c0_72] : memref<40x128xf32, #tpu.memory_space<vmem>>, vector<1x4xf32>
    %295 = arith.mulf %292, %294 : vector<1x4xf32>
    %296 = arith.addf %293, %295 : vector<1x4xf32>
    %cst_73 = arith.constant 0.000000e+00 : f32
    %297 = vector.broadcast %cst_73 : f32 to vector<8x128xf32>
    %c0_74 = arith.constant 0 : index
    %c0_75 = arith.constant 0 : index
    %298 = vector.load %arg3[%c0_74, %c0_75] : memref<8x128xf32, #tpu.memory_space<vmem>>, vector<8x128xf32>
    tpu.vector_store %arg3[%c0_74, %c0_75], %297 {strides = array<i32>} : memref<8x128xf32, #tpu.memory_space<vmem>>, vector<8x128xf32>,
    %c0_76 = arith.constant 0 : index
    %c0_77 = arith.constant 0 : index
    %299 = vector.load %arg3[%c0_76, %c0_77] : memref<8x128xf32, #tpu.memory_space<vmem>>, vector<1x4xf32>
    tpu.vector_store %arg3[%c0_76, %c0_77], %296 {strides = array<i32>} : memref<8x128xf32, #tpu.memory_space<vmem>>, vector<1x4xf32>,
    %c1 = arith.constant 1 : index
    %c0_78 = arith.constant 0 : index
    %300 = vector.load %arg3[%c1, %c0_78] : memref<8x128xf32, #tpu.memory_space<vmem>>, vector<1x32xf32>
    tpu.vector_store %arg3[%c1, %c0_78], %289 {strides = array<i32>} : memref<8x128xf32, #tpu.memory_space<vmem>>, vector<1x32xf32>,
    %c2 = arith.constant 2 : index
    %c0_79 = arith.constant 0 : index
    %301 = vector.load %arg3[%c2, %c0_79] : memref<8x128xf32, #tpu.memory_space<vmem>>, vector<1x32xf32>
    tpu.vector_store %arg3[%c2, %c0_79], %287 {strides = array<i32>} : memref<8x128xf32, #tpu.memory_space<vmem>>, vector<1x32xf32>,
    %c4 = arith.constant 4 : index
    %c0_80 = arith.constant 0 : index
    %302 = vector.load %arg3[%c4, %c0_80] : memref<8x128xf32, #tpu.memory_space<vmem>>, vector<4x32xf32>
    tpu.vector_store %arg3[%c4, %c0_80], %267 {strides = array<i32>} : memref<8x128xf32, #tpu.memory_space<vmem>>, vector<4x32xf32>,
    return
  }
}

</mosaic_0001>

<llo_original>
// kernel: simple_recurrent_ranker_forward.1
$region0: #{simple_recurrent_ranker_forward.1}
  #allocation0 [shape = 'u32[]', space=smem, size = 0x4, offset = 0x4, fixed_abs, tag = 'smem constant byte address 0x4 - core index']
  #allocation1 [shape = 'u32[144,128]{1,0:T(1,128)}', space=vmem, size = 0x12000, scoped, tag = 'internal scratch']
  #allocation2 [shape = 'f32[128,256]{1,0:T(8,128)}', space=vmem, size = 0x20000, scoped, tag = 'scratch operand']
  %s0 = inlined_call_operand.vmem [shape: f32[144,64], index: 0, kind: input, shape index: {}]
  %s1 = inlined_call_operand.vmem [shape: f32[136,256], index: 1, kind: input, shape index: {}]
  %s2 = inlined_call_operand.vmem [shape: f32[40,128], index: 2, kind: input, shape index: {}]
  %s3 = inlined_call_operand.vmem [shape: f32[8,128], index: 3, kind: output, shape index: {}]
  %s4 = sld [smem:[#allocation0]]
  $region22: #{simple_recurrent_ranker_forward.1} parent=0
    _
  %s6 = ssub.s32 1, %s4
  %s7 = scalar_select 0, %s6, %s4
  // Predicated region
  $region2: #{simple_recurrent_ranker_forward.1} parent=0 // pred_check
    _
  $region3: #{simple_recurrent_ranker_forward.1} parent=0 // pred_check_branch
    %9 = sbr.rel (0) target = $region5
  $region4: #{simple_recurrent_ranker_forward.1} parent=0 // pred_region
    _
  $region5: #{simple_recurrent_ranker_forward.1} parent=0 // pred_fallthru
    _
  // Predicated region
  $region6: #{simple_recurrent_ranker_forward.1} parent=0 // pred_check
    _
  $region7: #{simple_recurrent_ranker_forward.1} parent=0 // pred_check_branch
    %11 = sbr.rel (0) target = $region9
  $region8: #{simple_recurrent_ranker_forward.1} parent=0 // pred_region
    _
  $region9: #{simple_recurrent_ranker_forward.1} parent=0 // pred_fallthru
    _
  // Predicated region
  $region10: #{simple_recurrent_ranker_forward.1} parent=0 // pred_check
    _
  $region11: #{simple_recurrent_ranker_forward.1} parent=0 // pred_check_branch
    %13 = sbr.rel (0) target = $region13
  $region12: #{simple_recurrent_ranker_forward.1} parent=0 // pred_region
    _
  $region13: #{simple_recurrent_ranker_forward.1} parent=0 // pred_fallthru
    _
  %v15 = vld [vmem:[%s0] sm:$0xff]
  %v16 = vld [vmem:[%s0 + $0x8] sm:$0xff]
  %v17 = vld [vmem:[%s0 + $0x10] sm:$0xff]
  %v18 = vld [vmem:[%s0 + $0x18] sm:$0xff]
  %v19 = vld [vmem:[%s0 + $0x20] sm:$0xff]
  %v20 = vld [vmem:[%s0 + $0x28] sm:$0xff]
  %v21 = vld [vmem:[%s0 + $0x30] sm:$0xff]
  %v22 = vld [vmem:[%s0 + $0x38] sm:$0xff]
  %v23 = vld [vmem:[%s0 + $0x40] sm:$0xff]
  %v24 = vld [vmem:[%s0 + $0x48] sm:$0xff]
  %v25 = vld [vmem:[%s0 + $0x50] sm:$0xff]
  %v26 = vld [vmem:[%s0 + $0x58] sm:$0xff]
  %v27 = vld [vmem:[%s0 + $0x60] sm:$0xff]
  %v28 = vld [vmem:[%s0 + $0x68] sm:$0xff]
  %v29 = vld [vmem:[%s0 + $0x70] sm:$0xff]
  %v30 = vld [vmem:[%s0 + $0x78] sm:$0xff]
  %v31 = vld [vmem:[%s0 + $0x80] sm:$0xff]
  %v32 = vld [vmem:[%s0 + $0x88] sm:$0xff]
  %v33 = vld [vmem:[%s1] sm:$0xff]
  %v34 = vld [vmem:[%s1 + $0x8] sm:$0xff]
  %v35 = vld [vmem:[%s1 + $0x10] sm:$0xff]
  %v36 = vld [vmem:[%s1 + $0x18] sm:$0xff]
  %v37 = vld [vmem:[%s1 + $0x20] sm:$0xff]
  %v38 = vld [vmem:[%s1 + $0x28] sm:$0xff]
  %v39 = vld [vmem:[%s1 + $0x30] sm:$0xff]
  %v40 = vld [vmem:[%s1 + $0x38] sm:$0xff]
  %v41 = vld [vmem:[%s1 + $0x40] sm:$0xff]
  %v42 = vld [vmem:[%s1 + $0x48] sm:$0xff]
  %v43 = vld [vmem:[%s1 + $0x50] sm:$0xff]
  %v44 = vld [vmem:[%s1 + $0x58] sm:$0xff]
  %v45 = vld [vmem:[%s1 + $0x60] sm:$0xff]
  %v46 = vld [vmem:[%s1 + $0x68] sm:$0xff]
  %v47 = vld [vmem:[%s1 + $0x70] sm:$0xff]
  %v48 = vld [vmem:[%s1 + $0x78] sm:$0xff]
  %v49 = vpack.c.bf16 %v35, %v33
  %v50 = vpack.c.bf16 %v36, %v34
  %v51 = vpack.c.bf16 %v39, %v37
  %v52 = vpack.c.bf16 %v40, %v38
  %v53 = vpack.c.bf16 %v43, %v41
  %v54 = vpack.c.bf16 %v44, %v42
  %v55 = vpack.c.bf16 %v47, %v45
  %v56 = vpack.c.bf16 %v48, %v46
  %v57 = vld [vmem:[%s1 + $0x80] sm:$0xff]
  %v58 = vld [vmem:[%s1 + $0x88] sm:$0xff]
  %v59 = vld [vmem:[%s1 + $0x90] sm:$0xff]
  %v60 = vld [vmem:[%s1 + $0x98] sm:$0xff]
  %v61 = vld [vmem:[%s1 + $0xa0] sm:$0xff]
  %v62 = vld [vmem:[%s1 + $0xa8] sm:$0xff]
  %v63 = vld [vmem:[%s1 + $0xb0] sm:$0xff]
  %v64 = vld [vmem:[%s1 + $0xb8] sm:$0xff]
  %v65 = vld [vmem:[%s1 + $0xc0] sm:$0xff]
  %v66 = vld [vmem:[%s1 + $0xc8] sm:$0xff]
  %v67 = vld [vmem:[%s1 + $0xd0] sm:$0xff]
  %v68 = vld [vmem:[%s1 + $0xd8] sm:$0xff]
  %v69 = vld [vmem:[%s1 + $0xe0] sm:$0xff]
  %v70 = vld [vmem:[%s1 + $0xe8] sm:$0xff]
  %v71 = vld [vmem:[%s1 + $0xf0] sm:$0xff]
  %v72 = vld [vmem:[%s1 + $0xf8] sm:$0xff]
  %v73 = vpack.c.bf16 %v59, %v57
  %v74 = vpack.c.bf16 %v60, %v58
  %v75 = vpack.c.bf16 %v63, %v61
  %v76 = vpack.c.bf16 %v64, %v62
  %v77 = vpack.c.bf16 %v67, %v65
  %v78 = vpack.c.bf16 %v68, %v66
  %v79 = vpack.c.bf16 %v71, %v69
  %v80 = vpack.c.bf16 %v72, %v70
  %s81 = scalar_lea.vmem %s1, 256
  %v82 = vld [vmem:[%s81] ss:$8 sm:$0x3]
  %v83 = vpack.c.bf16 %v16, %v15
  %v84 = vpack.c.bf16 %v18, %v17
  %v85 = vpack.c.bf16 %v20, %v19
  %v86 = vpack.c.bf16 %v22, %v21
  %v87 = vpack.c.bf16 %v24, %v23
  %v88 = vpack.c.bf16 %v26, %v25
  %v89 = vpack.c.bf16 %v28, %v27
  %v90 = vpack.c.bf16 %v30, %v29
  %v92 = vlaneseq
  %v93 = vshrl.u32 %v92, 7
  %v94 = vsub.s32 0, %v93
  %v95 = vrot.slane %v82, %v94
  %v96 = vlaneseq
  %v97 = vshrl.u32 %v96, 7
  %v98 = vsub.s32 1, %v97
  %v99 = vrot.slane %v82, %v98
  %vm102 = vcmask 523264
  %v104 = vsel %vm102, %v83, 0
  %v107 = vsel %vm102, %v84, 0
  %v110 = vsel %vm102, %v85, 0
  %v113 = vsel %vm102, %v86, 0
  %v116 = vsel %vm102, %v87, 0
  %v119 = vsel %vm102, %v88, 0
  %v122 = vsel %vm102, %v89, 0
  %v125 = vsel %vm102, %v90, 0
  %127 = vmatprep.subr.bf16.mxu0 0
  %128 = vmatpush1.bf16.msra.mxu0 0
  %129 = vmatprep.subr.bf16.mxu0 0
  %130 = vmatpush1.bf16.msra.mxu0 0
  %131 = vmatprep.subr.bf16.mxu0 0
  %132 = vmatpush1.bf16.msra.mxu0 0
  %133 = vmatprep.subr.bf16.mxu0 0
  %134 = vmatpush1.bf16.msra.mxu0 0
  %135 = vmatprep.subr.bf16.mxu0 %v56
  %136 = vmatpush1.bf16.msra.mxu0 %v55
  %137 = vmatprep.subr.bf16.mxu0 %v54
  %138 = vmatpush1.bf16.msra.mxu0 %v53
  %139 = vmatprep.subr.bf16.mxu0 %v52
  %140 = vmatpush1.bf16.msra.mxu0 %v51
  %141 = vmatprep.subr.bf16.mxu0 %v50
  %142 = vmatpush1.bf16.msra.mxu0 %v49
  %143 = vmatprep.subr.bf16.mxu0 0
  %144 = vmatpush2.bf16.msra.mxu0 0
  %145 = vmatprep.subr.bf16.mxu0 0
  %146 = vmatpush2.bf16.msra.mxu0 0
  %147 = vmatprep.subr.bf16.mxu0 0
  %148 = vmatpush2.bf16.msra.mxu0 0
  %149 = vmatprep.subr.bf16.mxu0 0
  %150 = vmatpush2.bf16.msra.mxu0 0
  %151 = vmatprep.subr.bf16.mxu0 0
  %152 = vmatpush2.bf16.msra.mxu0 0
  %153 = vmatprep.subr.bf16.mxu0 0
  %154 = vmatpush2.bf16.msra.mxu0 0
  %155 = vmatprep.subr.bf16.mxu0 0
  %156 = vmatpush2.bf16.msra.mxu0 0
  %157 = vmatprep.subr.bf16.mxu0 0
  %158 = vmatpush2.bf16.msra.mxu0 0
  %159 = vmatprep.mubr.bf16.mxu0 0
  %160 = vmatmul.mubr.bf16.gmra.mxu0 %v104
  %v161 = vpop.f32.mrf.mxu0
  %v162 = vadd.f32 %v95, %v161
  %v163 = vpop.f32.mrf.mxu0
  %v164 = vadd.f32 %v99, %v163
  %v165 = vpop.f32.mrf.mxu0
  %v166 = vadd.f32 %v95, %v165
  %v167 = vpop.f32.mrf.mxu0
  %v168 = vadd.f32 %v99, %v167
  %169 = vmatprep.mubr.bf16.mxu0 0
  %170 = vmatmul.mubr.bf16.gmra.mxu0 %v107
  %v171 = vpop.f32.mrf.mxu0
  %v172 = vadd.f32 %v95, %v171
  %v173 = vpop.f32.mrf.mxu0
  %v174 = vadd.f32 %v99, %v173
  %v175 = vpop.f32.mrf.mxu0
  %v176 = vadd.f32 %v95, %v175
  %v177 = vpop.f32.mrf.mxu0
  %v178 = vadd.f32 %v99, %v177
  %179 = vmatprep.mubr.bf16.mxu0 0
  %180 = vmatmul.mubr.bf16.gmra.mxu0 %v110
  %v181 = vpop.f32.mrf.mxu0
  %v182 = vadd.f32 %v95, %v181
  %v183 = vpop.f32.mrf.mxu0
  %v184 = vadd.f32 %v99, %v183
  %v185 = vpop.f32.mrf.mxu0
  %v186 = vadd.f32 %v95, %v185
  %v187 = vpop.f32.mrf.mxu0
  %v188 = vadd.f32 %v99, %v187
  %189 = vmatprep.mubr.bf16.mxu0 0
  %190 = vmatmul.mubr.bf16.gmra.mxu0 %v113
  %v191 = vpop.f32.mrf.mxu0
  %v192 = vadd.f32 %v95, %v191
  %v193 = vpop.f32.mrf.mxu0
  %v194 = vadd.f32 %v99, %v193
  %v195 = vpop.f32.mrf.mxu0
  %v196 = vadd.f32 %v95, %v195
  %v197 = vpop.f32.mrf.mxu0
  %v198 = vadd.f32 %v99, %v197
  %199 = vmatprep.mubr.bf16.mxu0 0
  %200 = vmatmul.mubr.bf16.gmra.mxu0 %v116
  %v201 = vpop.f32.mrf.mxu0
  %v202 = vadd.f32 %v95, %v201
  %v203 = vpop.f32.mrf.mxu0
  %v204 = vadd.f32 %v99, %v203
  %v205 = vpop.f32.mrf.mxu0
  %v206 = vadd.f32 %v95, %v205
  %v207 = vpop.f32.mrf.mxu0
  %v208 = vadd.f32 %v99, %v207
  %209 = vmatprep.mubr.bf16.mxu0 0
  %210 = vmatmul.mubr.bf16.gmra.mxu0 %v119
  %v211 = vpop.f32.mrf.mxu0
  %v212 = vadd.f32 %v95, %v211
  %v213 = vpop.f32.mrf.mxu0
  %v214 = vadd.f32 %v99, %v213
  %v215 = vpop.f32.mrf.mxu0
  %v216 = vadd.f32 %v95, %v215
  %v217 = vpop.f32.mrf.mxu0
  %v218 = vadd.f32 %v99, %v217
  %219 = vmatprep.mubr.bf16.mxu0 0
  %220 = vmatmul.mubr.bf16.gmra.mxu0 %v122
  %v221 = vpop.f32.mrf.mxu0
  %v222 = vadd.f32 %v95, %v221
  %v223 = vpop.f32.mrf.mxu0
  %v224 = vadd.f32 %v99, %v223
  %v225 = vpop.f32.mrf.mxu0
  %v226 = vadd.f32 %v95, %v225
  %v227 = vpop.f32.mrf.mxu0
  %v228 = vadd.f32 %v99, %v227
  %229 = vmatprep.mubr.bf16.mxu0 0
  %230 = vmatmul.mubr.bf16.gmra.mxu0 %v125
  %v231 = vpop.f32.mrf.mxu0
  %v232 = vadd.f32 %v95, %v231
  %v233 = vpop.f32.mrf.mxu0
  %v234 = vadd.f32 %v99, %v233
  %v235 = vpop.f32.mrf.mxu0
  %v236 = vadd.f32 %v95, %v235
  %v237 = vpop.f32.mrf.mxu0
  %v238 = vadd.f32 %v99, %v237
  %239 = vdwg.mxu0
  %v240 = vlaneseq
  %v241 = vand.u32 %v240, 127
  %v242 = vadd.s32 %v241, 128
  %vm243 = vcmp.lt.s32.totalorder %v241, 0
  %v244 = vsub.s32 0, %v241
  %v245 = vsel %vm243, %v244, %v241
  %v246 = vshrl.u32 %v245, 5
  %v247 = vand.u32 %v245, 31
  %v248 = vsub.s32 0, %v247
  %v249 = vsel %vm243, %v248, %v247
  %vm250 = vcmp.lt.s32.totalorder %v242, 0
  %v251 = vsub.s32 0, %v242
  %v252 = vsel %vm250, %v251, %v242
  %v253 = vshrl.u32 %v252, 5
  %v254 = vand.u32 %v252, 31
  %v255 = vsub.s32 0, %v254
  %v256 = vsel %vm250, %v255, %v254
  %vm257 = vcmp.ne.s32.totalorder %v249, 0
  %vm258 = vcmp.ne.s32.totalorder %v256, 0
  %vm259 = vcmp.lt.s32.totalorder %v249, 0
  %vm260 = vcmp.lt.s32.totalorder %v256, 0
  %vm261 = vmand %vm259, %vm257
  %vm262 = vmand %vm260, %vm258
  %v263 = vadd.s32 %v249, 32
  %v264 = vadd.s32 %v256, 32
  %v265 = vsel %vm261, %v263, %v249
  %v266 = vsel %vm262, %v264, %v256
  %vm267 = vcmp.lt.s32.totalorder %v265, 16
  %vm268 = vcmp.lt.s32.totalorder %v266, 16
  %v269 = vsel %vm267, 1, 0
  %v270 = vsel %vm268, 1, 0
  %vm271 = vcmp.eq.s32.totalorder %v269, 1
  %vm272 = vcmp.eq.s32.totalorder %v270, 1
  %v273 = vsel %vm271, %v162, %v232
  %v274 = vsel %vm272, %v164, %v234
  %v275 = vsel %vm271, %v166, %v236
  %v276 = vsel %vm272, %v168, %v238
  %277 = vst [vmem:[#allocation2] sm:$0xff] %v273
  %278 = vst [vmem:[#allocation2 + $0x8] sm:$0xff] %v274
  %279 = vst [vmem:[#allocation2 + $0x10] sm:$0xff] %v275
  %280 = vst [vmem:[#allocation2 + $0x18] sm:$0xff] %v276
  %v281 = vsel %vm271, %v172, %v222
  %v282 = vsel %vm272, %v174, %v224
  %v283 = vsel %vm271, %v176, %v226
  %v284 = vsel %vm272, %v178, %v228
  %285 = vst [vmem:[#allocation2 + $0x20] sm:$0xff] %v281
  %286 = vst [vmem:[#allocation2 + $0x28] sm:$0xff] %v282
  %287 = vst [vmem:[#allocation2 + $0x30] sm:$0xff] %v283
  %288 = vst [vmem:[#allocation2 + $0x38] sm:$0xff] %v284
  %v289 = vsel %vm271, %v182, %v212
  %v290 = vsel %vm272, %v184, %v214
  %v291 = vsel %vm271, %v186, %v216
  %v292 = vsel %vm272, %v188, %v218
  %293 = vst [vmem:[#allocation2 + $0x40] sm:$0xff] %v289
  %294 = vst [vmem:[#allocation2 + $0x48] sm:$0xff] %v290
  %295 = vst [vmem:[#allocation2 + $0x50] sm:$0xff] %v291
  %296 = vst [vmem:[#allocation2 + $0x58] sm:$0xff] %v292
  %v297 = vsel %vm271, %v192, %v202
  %v298 = vsel %vm272, %v194, %v204
  %v299 = vsel %vm271, %v196, %v206
  %v300 = vsel %vm272, %v198, %v208
  %301 = vst [vmem:[#allocation2 + $0x60] sm:$0xff] %v297
  %302 = vst [vmem:[#allocation2 + $0x68] sm:$0xff] %v298
  %303 = vst [vmem:[#allocation2 + $0x70] sm:$0xff] %v299
  %304 = vst [vmem:[#allocation2 + $0x78] sm:$0xff] %v300
  %v305 = vsel %vm271, %v202, %v192
  %v306 = vsel %vm272, %v204, %v194
  %v307 = vsel %vm271, %v206, %v196
  %v308 = vsel %vm272, %v208, %v198
  %309 = vst [vmem:[#allocation2 + $0x80] sm:$0xff] %v305
  %310 = vst [vmem:[#allocation2 + $0x88] sm:$0xff] %v306
  %311 = vst [vmem:[#allocation2 + $0x90] sm:$0xff] %v307
  %312 = vst [vmem:[#allocation2 + $0x98] sm:$0xff] %v308
  %v313 = vsel %vm271, %v212, %v182
  %v314 = vsel %vm272, %v214, %v184
  %v315 = vsel %vm271, %v216, %v186
  %v316 = vsel %vm272, %v218, %v188
  %317 = vst [vmem:[#allocation2 + $0xa0] sm:$0xff] %v313
  %318 = vst [vmem:[#allocation2 + $0xa8] sm:$0xff] %v314
  %319 = vst [vmem:[#allocation2 + $0xb0] sm:$0xff] %v315
  %320 = vst [vmem:[#allocation2 + $0xb8] sm:$0xff] %v316
  %v321 = vsel %vm271, %v222, %v172
  %v322 = vsel %vm272, %v224, %v174
  %v323 = vsel %vm271, %v226, %v176
  %v324 = vsel %vm272, %v228, %v178
  %325 = vst [vmem:[#allocation2 + $0xc0] sm:$0xff] %v321
  %326 = vst [vmem:[#allocation2 + $0xc8] sm:$0xff] %v322
  %327 = vst [vmem:[#allocation2 + $0xd0] sm:$0xff] %v323
  %328 = vst [vmem:[#allocation2 + $0xd8] sm:$0xff] %v324
  %v329 = vsel %vm271, %v232, %v162
  %v330 = vsel %vm272, %v234, %v164
  %v331 = vsel %vm271, %v236, %v166
  %v332 = vsel %vm272, %v238, %v168
  %333 = vst [vmem:[#allocation2 + $0xe0] sm:$0xff] %v329
  %334 = vst [vmem:[#allocation2 + $0xe8] sm:$0xff] %v330
  %335 = vst [vmem:[#allocation2 + $0xf0] sm:$0xff] %v331
  %336 = vst [vmem:[#allocation2 + $0xf8] sm:$0xff] %v332
  %v337 = vld [vmem:[#allocation2] sm:$0xff]
  %v338 = vld [vmem:[#allocation2 + $0x8] sm:$0xff]
  %v339 = vld [vmem:[#allocation2 + $0x10] sm:$0xff]
  %v340 = vld [vmem:[#allocation2 + $0x18] sm:$0xff]
  %v342 = vsel %vm102, 0, 0
  %344 = vmatprep.subr.bf16.mxu0 0
  %345 = vmatpush1.bf16.msra.mxu0 0
  %346 = vmatprep.subr.bf16.mxu0 0
  %347 = vmatpush1.bf16.msra.mxu0 0
  %348 = vmatprep.subr.bf16.mxu0 0
  %349 = vmatpush1.bf16.msra.mxu0 0
  %350 = vmatprep.subr.bf16.mxu0 0
  %351 = vmatpush1.bf16.msra.mxu0 0
  %352 = vmatprep.subr.bf16.mxu0 %v80
  %353 = vmatpush1.bf16.msra.mxu0 %v79
  %354 = vmatprep.subr.bf16.mxu0 %v78
  %355 = vmatpush1.bf16.msra.mxu0 %v77
  %356 = vmatprep.subr.bf16.mxu0 %v76
  %357 = vmatpush1.bf16.msra.mxu0 %v75
  %358 = vmatprep.subr.bf16.mxu0 %v74
  %359 = vmatpush1.bf16.msra.mxu0 %v73
  %360 = vmatprep.subr.bf16.mxu0 0
  %361 = vmatpush2.bf16.msra.mxu0 0
  %362 = vmatprep.subr.bf16.mxu0 0
  %363 = vmatpush2.bf16.msra.mxu0 0
  %364 = vmatprep.subr.bf16.mxu0 0
  %365 = vmatpush2.bf16.msra.mxu0 0
  %366 = vmatprep.subr.bf16.mxu0 0
  %367 = vmatpush2.bf16.msra.mxu0 0
  %368 = vmatprep.subr.bf16.mxu0 0
  %369 = vmatpush2.bf16.msra.mxu0 0
  %370 = vmatprep.subr.bf16.mxu0 0
  %371 = vmatpush2.bf16.msra.mxu0 0
  %372 = vmatprep.subr.bf16.mxu0 0
  %373 = vmatpush2.bf16.msra.mxu0 0
  %374 = vmatprep.subr.bf16.mxu0 0
  %375 = vmatpush2.bf16.msra.mxu0 0
  %376 = vmatprep.mubr.bf16.mxu0 0
  %377 = vmatmul.mubr.bf16.gmra.mxu0 %v342
  %v378 = vpop.f32.mrf.mxu0
  %v379 = vadd.f32 0.0, %v378
  %v380 = vpop.f32.mrf.mxu0
  %v381 = vadd.f32 0.0, %v380
  %v382 = vpop.f32.mrf.mxu0
  %v383 = vadd.f32 0.0, %v382
  %v384 = vpop.f32.mrf.mxu0
  %v385 = vadd.f32 0.0, %v384
  %386 = vdwg.mxu0
  %v387 = vadd.f32 %v337, %v379
  %v388 = vadd.f32 %v338, %v381
  %v389 = vadd.f32 %v339, %v383
  %v390 = vadd.f32 %v340, %v385
  %v391 = vxor.u32 %v387, 2147483648
  %v392 = vxor.u32 %v388, 2147483648
  %v393 = vxor.u32 %v389, 2147483648
  %v394 = vxor.u32 %v390, 2147483648
  %v395 = vmul.f32 %v391, 1.442695
  %v396 = vpow.pop %v395
  %v397 = vmul.f32 %v392, 1.442695
  %v398 = vpow.pop %v397
  %v399 = vmul.f32 %v393, 1.442695
  %v400 = vpow.pop %v399
  %v401 = vmul.f32 %v394, 1.442695
  %v402 = vpow.pop %v401
  %v403 = vadd.f32 %v396, 1.0
  %v404 = vadd.f32 %v398, 1.0
  %v405 = vadd.f32 %v400, 1.0
  %v406 = vadd.f32 %v402, 1.0
  %v407 = vrcp.pop %v403
  %v408 = vmul.f32 1.0, %v407
  %v409 = vrcp.pop %v404
  %v410 = vmul.f32 1.0, %v409
  %v411 = vrcp.pop %v405
  %v412 = vmul.f32 1.0, %v411
  %v413 = vrcp.pop %v406
  %v414 = vmul.f32 1.0, %v413
  %v415 = vtanh.pop %v388
  %v416 = vtanh.pop %v390
  %v417 = vmul.f32 %v408, 0.0
  %v418 = vmul.f32 %v412, 0.0
  %421 = vrot.lane.b32.xlu0 %v415, 64
  %v422 = vpop.permute.xlu0 %421
  %423 = vrot.lane.b32.xlu0 %v416, 64
  %v424 = vpop.permute.xlu0 %423
  %v427 = vmul.f32 %v408, %v422
  %v428 = vmul.f32 %v412, %v424
  %431 = vrot.lane.b32.xlu0 %v427, 64
  %v432 = vpop.permute.xlu0 %431
  %433 = vrot.lane.b32.xlu0 %v428, 64
  %v434 = vpop.permute.xlu0 %433
  %v437 = vadd.f32 %v417, %v432
  %v438 = vadd.f32 %v418, %v434
  %v439 = vtanh.pop %v437
  %v440 = vtanh.pop %v438
  %443 = vrot.lane.b32.xlu0 %v439, 64
  %v444 = vpop.permute.xlu0 %443
  %445 = vrot.lane.b32.xlu0 %v440, 64
  %v446 = vpop.permute.xlu0 %445
  %v449 = vmul.f32 %v410, %v444
  %v450 = vmul.f32 %v414, %v446
  %vm451 = vcmp.eq.f32.partialorder %v31, 0.0
  %vm452 = vcmp.eq.f32.partialorder %v32, 0.0
  %v453 = vsel %vm451, %v449, 0.0
  %v454 = vsel %vm452, %v450, 0.0
  %v455 = vld [vmem:[#allocation2 + $0x20] sm:$0xff]
  %v456 = vld [vmem:[#allocation2 + $0x28] sm:$0xff]
  %v457 = vld [vmem:[#allocation2 + $0x30] sm:$0xff]
  %v458 = vld [vmem:[#allocation2 + $0x38] sm:$0xff]
  %v459 = vpack.c.bf16 %v450, %v449
  %v461 = vsel %vm102, %v459, 0
  %463 = vmatprep.subr.bf16.mxu0 0
  %464 = vmatpush1.bf16.msra.mxu0 0
  %465 = vmatprep.subr.bf16.mxu0 0
  %466 = vmatpush1.bf16.msra.mxu0 0
  %467 = vmatprep.subr.bf16.mxu0 0
  %468 = vmatpush1.bf16.msra.mxu0 0
  %469 = vmatprep.subr.bf16.mxu0 0
  %470 = vmatpush1.bf16.msra.mxu0 0
  %471 = vmatprep.subr.bf16.mxu0 %v80
  %472 = vmatpush1.bf16.msra.mxu0 %v79
  %473 = vmatprep.subr.bf16.mxu0 %v78
  %474 = vmatpush1.bf16.msra.mxu0 %v77
  %475 = vmatprep.subr.bf16.mxu0 %v76
  %476 = vmatpush1.bf16.msra.mxu0 %v75
  %477 = vmatprep.subr.bf16.mxu0 %v74
  %478 = vmatpush1.bf16.msra.mxu0 %v73
  %479 = vmatprep.subr.bf16.mxu0 0
  %480 = vmatpush2.bf16.msra.mxu0 0
  %481 = vmatprep.subr.bf16.mxu0 0
  %482 = vmatpush2.bf16.msra.mxu0 0
  %483 = vmatprep.subr.bf16.mxu0 0
  %484 = vmatpush2.bf16.msra.mxu0 0
  %485 = vmatprep.subr.bf16.mxu0 0
  %486 = vmatpush2.bf16.msra.mxu0 0
  %487 = vmatprep.subr.bf16.mxu0 0
  %488 = vmatpush2.bf16.msra.mxu0 0
  %489 = vmatprep.subr.bf16.mxu0 0
  %490 = vmatpush2.bf16.msra.mxu0 0
  %491 = vmatprep.subr.bf16.mxu0 0
  %492 = vmatpush2.bf16.msra.mxu0 0
  %493 = vmatprep.subr.bf16.mxu0 0
  %494 = vmatpush2.bf16.msra.mxu0 0
  %495 = vmatprep.mubr.bf16.mxu0 0
  %496 = vmatmul.mubr.bf16.gmra.mxu0 %v461
  %v497 = vpop.f32.mrf.mxu0
  %v498 = vadd.f32 0.0, %v497
  %v499 = vpop.f32.mrf.mxu0
  %v500 = vadd.f32 0.0, %v499
  %v501 = vpop.f32.mrf.mxu0
  %v502 = vadd.f32 0.0, %v501
  %v503 = vpop.f32.mrf.mxu0
  %v504 = vadd.f32 0.0, %v503
  %505 = vdwg.mxu0
  %v506 = vadd.f32 %v455, %v498
  %v507 = vadd.f32 %v456, %v500
  %v508 = vadd.f32 %v457, %v502
  %v509 = vadd.f32 %v458, %v504
  %v510 = vxor.u32 %v506, 2147483648
  %v511 = vxor.u32 %v507, 2147483648
  %v512 = vxor.u32 %v508, 2147483648
  %v513 = vxor.u32 %v509, 2147483648
  %v514 = vmul.f32 %v510, 1.442695
  %v515 = vpow.pop %v514
  %v516 = vmul.f32 %v511, 1.442695
  %v517 = vpow.pop %v516
  %v518 = vmul.f32 %v512, 1.442695
  %v519 = vpow.pop %v518
  %v520 = vmul.f32 %v513, 1.442695
  %v521 = vpow.pop %v520
  %v522 = vadd.f32 %v515, 1.0
  %v523 = vadd.f32 %v517, 1.0
  %v524 = vadd.f32 %v519, 1.0
  %v525 = vadd.f32 %v521, 1.0
  %v526 = vrcp.pop %v522
  %v527 = vmul.f32 1.0, %v526
  %v528 = vrcp.pop %v523
  %v529 = vmul.f32 1.0, %v528
  %v530 = vrcp.pop %v524
  %v531 = vmul.f32 1.0, %v530
  %v532 = vrcp.pop %v525
  %v533 = vmul.f32 1.0, %v532
  %v534 = vtanh.pop %v507
  %v535 = vtanh.pop %v509
  %v536 = vmul.f32 %v527, %v437
  %v537 = vmul.f32 %v531, %v438
  %540 = vrot.lane.b32.xlu0 %v534, 64
  %v541 = vpop.permute.xlu0 %540
  %542 = vrot.lane.b32.xlu0 %v535, 64
  %v543 = vpop.permute.xlu0 %542
  %v546 = vmul.f32 %v527, %v541
  %v547 = vmul.f32 %v531, %v543
  %550 = vrot.lane.b32.xlu0 %v546, 64
  %v551 = vpop.permute.xlu0 %550
  %552 = vrot.lane.b32.xlu0 %v547, 64
  %v553 = vpop.permute.xlu0 %552
  %v556 = vadd.f32 %v536, %v551
  %v557 = vadd.f32 %v537, %v553
  %v558 = vtanh.pop %v556
  %v559 = vtanh.pop %v557
  %562 = vrot.lane.b32.xlu0 %v558, 64
  %v563 = vpop.permute.xlu0 %562
  %564 = vrot.lane.b32.xlu0 %v559, 64
  %v565 = vpop.permute.xlu0 %564
  %v568 = vmul.f32 %v529, %v563
  %v569 = vmul.f32 %v533, %v565
  %vm570 = vcmp.eq.f32.partialorder %v31, 1.0
  %vm571 = vcmp.eq.f32.partialorder %v32, 1.0
  %v572 = vsel %vm570, %v568, %v453
  %v573 = vsel %vm571, %v569, %v454
  %v574 = vld [vmem:[#allocation2 + $0x40] sm:$0xff]
  %v575 = vld [vmem:[#allocation2 + $0x48] sm:$0xff]
  %v576 = vld [vmem:[#allocation2 + $0x50] sm:$0xff]
  %v577 = vld [vmem:[#allocation2 + $0x58] sm:$0xff]
  %v578 = vpack.c.bf16 %v569, %v568
  %v580 = vsel %vm102, %v578, 0
  %582 = vmatprep.subr.bf16.mxu0 0
  %583 = vmatpush1.bf16.msra.mxu0 0
  %584 = vmatprep.subr.bf16.mxu0 0
  %585 = vmatpush1.bf16.msra.mxu0 0
  %586 = vmatprep.subr.bf16.mxu0 0
  %587 = vmatpush1.bf16.msra.mxu0 0
  %588 = vmatprep.subr.bf16.mxu0 0
  %589 = vmatpush1.bf16.msra.mxu0 0
  %590 = vmatprep.subr.bf16.mxu0 %v80
  %591 = vmatpush1.bf16.msra.mxu0 %v79
  %592 = vmatprep.subr.bf16.mxu0 %v78
  %593 = vmatpush1.bf16.msra.mxu0 %v77
  %594 = vmatprep.subr.bf16.mxu0 %v76
  %595 = vmatpush1.bf16.msra.mxu0 %v75
  %596 = vmatprep.subr.bf16.mxu0 %v74
  %597 = vmatpush1.bf16.msra.mxu0 %v73
  %598 = vmatprep.subr.bf16.mxu0 0
  %599 = vmatpush2.bf16.msra.mxu0 0
  %600 = vmatprep.subr.bf16.mxu0 0
  %601 = vmatpush2.bf16.msra.mxu0 0
  %602 = vmatprep.subr.bf16.mxu0 0
  %603 = vmatpush2.bf16.msra.mxu0 0
  %604 = vmatprep.subr.bf16.mxu0 0
  %605 = vmatpush2.bf16.msra.mxu0 0
  %606 = vmatprep.subr.bf16.mxu0 0
  %607 = vmatpush2.bf16.msra.mxu0 0
  %608 = vmatprep.subr.bf16.mxu0 0
  %609 = vmatpush2.bf16.msra.mxu0 0
  %610 = vmatprep.subr.bf16.mxu0 0
  %611 = vmatpush2.bf16.msra.mxu0 0
  %612 = vmatprep.subr.bf16.mxu0 0
  %613 = vmatpush2.bf16.msra.mxu0 0
  %614 = vmatprep.mubr.bf16.mxu0 0
  %615 = vmatmul.mubr.bf16.gmra.mxu0 %v580
  %v616 = vpop.f32.mrf.mxu0
  %v617 = vadd.f32 0.0, %v616
  %v618 = vpop.f32.mrf.mxu0
  %v619 = vadd.f32 0.0, %v618
  %v620 = vpop.f32.mrf.mxu0
  %v621 = vadd.f32 0.0, %v620
  %v622 = vpop.f32.mrf.mxu0
  %v623 = vadd.f32 0.0, %v622
  %624 = vdwg.mxu0
  %v625 = vadd.f32 %v574, %v617
  %v626 = vadd.f32 %v575, %v619
  %v627 = vadd.f32 %v576, %v621
  %v628 = vadd.f32 %v577, %v623
  %v629 = vxor.u32 %v625, 2147483648
  %v630 = vxor.u32 %v626, 2147483648
  %v631 = vxor.u32 %v627, 2147483648
  %v632 = vxor.u32 %v628, 2147483648
  %v633 = vmul.f32 %v629, 1.442695
  %v634 = vpow.pop %v633
  %v635 = vmul.f32 %v630, 1.442695
  %v636 = vpow.pop %v635
  %v637 = vmul.f32 %v631, 1.442695
  %v638 = vpow.pop %v637
  %v639 = vmul.f32 %v632, 1.442695
  %v640 = vpow.pop %v639
  %v641 = vadd.f32 %v634, 1.0
  %v642 = vadd.f32 %v636, 1.0
  %v643 = vadd.f32 %v638, 1.0
  %v644 = vadd.f32 %v640, 1.0
  %v645 = vrcp.pop %v641
  %v646 = vmul.f32 1.0, %v645
  %v647 = vrcp.pop %v642
  %v648 = vmul.f32 1.0, %v647
  %v649 = vrcp.pop %v643
  %v650 = vmul.f32 1.0, %v649
  %v651 = vrcp.pop %v644
  %v652 = vmul.f32 1.0, %v651
  %v653 = vtanh.pop %v626
  %v654 = vtanh.pop %v628
  %v655 = vmul.f32 %v646, %v556
  %v656 = vmul.f32 %v650, %v557
  %659 = vrot.lane.b32.xlu0 %v653, 64
  %v660 = vpop.permute.xlu0 %659
  %661 = vrot.lane.b32.xlu0 %v654, 64
  %v662 = vpop.permute.xlu0 %661
  %v665 = vmul.f32 %v646, %v660
  %v666 = vmul.f32 %v650, %v662
  %669 = vrot.lane.b32.xlu0 %v665, 64
  %v670 = vpop.permute.xlu0 %669
  %671 = vrot.lane.b32.xlu0 %v666, 64
  %v672 = vpop.permute.xlu0 %671
  %v675 = vadd.f32 %v655, %v670
  %v676 = vadd.f32 %v656, %v672
  %v677 = vtanh.pop %v675
  %v678 = vtanh.pop %v676
  %681 = vrot.lane.b32.xlu0 %v677, 64
  %v682 = vpop.permute.xlu0 %681
  %683 = vrot.lane.b32.xlu0 %v678, 64
  %v684 = vpop.permute.xlu0 %683
  %v687 = vmul.f32 %v648, %v682
  %v688 = vmul.f32 %v652, %v684
  %vm689 = vcmp.eq.f32.partialorder %v31, 2.0
  %vm690 = vcmp.eq.f32.partialorder %v32, 2.0
  %v691 = vsel %vm689, %v687, %v572
  %v692 = vsel %vm690, %v688, %v573
  %v693 = vld [vmem:[#allocation2 + $0x60] sm:$0xff]
  %v694 = vld [vmem:[#allocation2 + $0x68] sm:$0xff]
  %v695 = vld [vmem:[#allocation2 + $0x70] sm:$0xff]
  %v696 = vld [vmem:[#allocation2 + $0x78] sm:$0xff]
  %v697 = vpack.c.bf16 %v688, %v687
  %v699 = vsel %vm102, %v697, 0
  %701 = vmatprep.subr.bf16.mxu0 0
  %702 = vmatpush1.bf16.msra.mxu0 0
  %703 = vmatprep.subr.bf16.mxu0 0
  %704 = vmatpush1.bf16.msra.mxu0 0
  %705 = vmatprep.subr.bf16.mxu0 0
  %706 = vmatpush1.bf16.msra.mxu0 0
  %707 = vmatprep.subr.bf16.mxu0 0
  %708 = vmatpush1.bf16.msra.mxu0 0
  %709 = vmatprep.subr.bf16.mxu0 %v80
  %710 = vmatpush1.bf16.msra.mxu0 %v79
  %711 = vmatprep.subr.bf16.mxu0 %v78
  %712 = vmatpush1.bf16.msra.mxu0 %v77
  %713 = vmatprep.subr.bf16.mxu0 %v76
  %714 = vmatpush1.bf16.msra.mxu0 %v75
  %715 = vmatprep.subr.bf16.mxu0 %v74
  %716 = vmatpush1.bf16.msra.mxu0 %v73
  %717 = vmatprep.subr.bf16.mxu0 0
  %718 = vmatpush2.bf16.msra.mxu0 0
  %719 = vmatprep.subr.bf16.mxu0 0
  %720 = vmatpush2.bf16.msra.mxu0 0
  %721 = vmatprep.subr.bf16.mxu0 0
  %722 = vmatpush2.bf16.msra.mxu0 0
  %723 = vmatprep.subr.bf16.mxu0 0
  %724 = vmatpush2.bf16.msra.mxu0 0
  %725 = vmatprep.subr.bf16.mxu0 0
  %726 = vmatpush2.bf16.msra.mxu0 0
  %727 = vmatprep.subr.bf16.mxu0 0
  %728 = vmatpush2.bf16.msra.mxu0 0
  %729 = vmatprep.subr.bf16.mxu0 0
  %730 = vmatpush2.bf16.msra.mxu0 0
  %731 = vmatprep.subr.bf16.mxu0 0
  %732 = vmatpush2.bf16.msra.mxu0 0
  %733 = vmatprep.mubr.bf16.mxu0 0
  %734 = vmatmul.mubr.bf16.gmra.mxu0 %v699
  %v735 = vpop.f32.mrf.mxu0
  %v736 = vadd.f32 0.0, %v735
  %v737 = vpop.f32.mrf.mxu0
  %v738 = vadd.f32 0.0, %v737
  %v739 = vpop.f32.mrf.mxu0
  %v740 = vadd.f32 0.0, %v739
  %v741 = vpop.f32.mrf.mxu0
  %v742 = vadd.f32 0.0, %v741
  %743 = vdwg.mxu0
  %v744 = vadd.f32 %v693, %v736
  %v745 = vadd.f32 %v694, %v738
  %v746 = vadd.f32 %v695, %v740
  %v747 = vadd.f32 %v696, %v742
  %v748 = vxor.u32 %v744, 2147483648
  %v749 = vxor.u32 %v745, 2147483648
  %v750 = vxor.u32 %v746, 2147483648
  %v751 = vxor.u32 %v747, 2147483648
  %v752 = vmul.f32 %v748, 1.442695
  %v753 = vpow.pop %v752
  %v754 = vmul.f32 %v749, 1.442695
  %v755 = vpow.pop %v754
  %v756 = vmul.f32 %v750, 1.442695
  %v757 = vpow.pop %v756
  %v758 = vmul.f32 %v751, 1.442695
  %v759 = vpow.pop %v758
  %v760 = vadd.f32 %v753, 1.0
  %v761 = vadd.f32 %v755, 1.0
  %v762 = vadd.f32 %v757, 1.0
  %v763 = vadd.f32 %v759, 1.0
  %v764 = vrcp.pop %v760
  %v765 = vmul.f32 1.0, %v764
  %v766 = vrcp.pop %v761
  %v767 = vmul.f32 1.0, %v766
  %v768 = vrcp.pop %v762
  %v769 = vmul.f32 1.0, %v768
  %v770 = vrcp.pop %v763
  %v771 = vmul.f32 1.0, %v770
  %v772 = vtanh.pop %v745
  %v773 = vtanh.pop %v747
  %v774 = vmul.f32 %v765, %v675
  %v775 = vmul.f32 %v769, %v676
  %778 = vrot.lane.b32.xlu0 %v772, 64
  %v779 = vpop.permute.xlu0 %778
  %780 = vrot.lane.b32.xlu0 %v773, 64
  %v781 = vpop.permute.xlu0 %780
  %v784 = vmul.f32 %v765, %v779
  %v785 = vmul.f32 %v769, %v781
  %788 = vrot.lane.b32.xlu0 %v784, 64
  %v789 = vpop.permute.xlu0 %788
  %790 = vrot.lane.b32.xlu0 %v785, 64
  %v791 = vpop.permute.xlu0 %790
  %v794 = vadd.f32 %v774, %v789
  %v795 = vadd.f32 %v775, %v791
  %v796 = vtanh.pop %v794
  %v797 = vtanh.pop %v795
  %800 = vrot.lane.b32.xlu0 %v796, 64
  %v801 = vpop.permute.xlu0 %800
  %802 = vrot.lane.b32.xlu0 %v797, 64
  %v803 = vpop.permute.xlu0 %802
  %v806 = vmul.f32 %v767, %v801
  %v807 = vmul.f32 %v771, %v803
  %vm808 = vcmp.eq.f32.partialorder %v31, 3.0
  %vm809 = vcmp.eq.f32.partialorder %v32, 3.0
  %v810 = vsel %vm808, %v806, %v691
  %v811 = vsel %vm809, %v807, %v692
  %v812 = vld [vmem:[#allocation2 + $0x80] sm:$0xff]
  %v813 = vld [vmem:[#allocation2 + $0x88] sm:$0xff]
  %v814 = vld [vmem:[#allocation2 + $0x90] sm:$0xff]
  %v815 = vld [vmem:[#allocation2 + $0x98] sm:$0xff]
  %v816 = vpack.c.bf16 %v807, %v806
  %v818 = vsel %vm102, %v816, 0
  %820 = vmatprep.subr.bf16.mxu0 0
  %821 = vmatpush1.bf16.msra.mxu0 0
  %822 = vmatprep.subr.bf16.mxu0 0
  %823 = vmatpush1.bf16.msra.mxu0 0
  %824 = vmatprep.subr.bf16.mxu0 0
  %825 = vmatpush1.bf16.msra.mxu0 0
  %826 = vmatprep.subr.bf16.mxu0 0
  %827 = vmatpush1.bf16.msra.mxu0 0
  %828 = vmatprep.subr.bf16.mxu0 %v80
  %829 = vmatpush1.bf16.msra.mxu0 %v79
  %830 = vmatprep.subr.bf16.mxu0 %v78
  %831 = vmatpush1.bf16.msra.mxu0 %v77
  %832 = vmatprep.subr.bf16.mxu0 %v76
  %833 = vmatpush1.bf16.msra.mxu0 %v75
  %834 = vmatprep.subr.bf16.mxu0 %v74
  %835 = vmatpush1.bf16.msra.mxu0 %v73
  %836 = vmatprep.subr.bf16.mxu0 0
  %837 = vmatpush2.bf16.msra.mxu0 0
  %838 = vmatprep.subr.bf16.mxu0 0
  %839 = vmatpush2.bf16.msra.mxu0 0
  %840 = vmatprep.subr.bf16.mxu0 0
  %841 = vmatpush2.bf16.msra.mxu0 0
  %842 = vmatprep.subr.bf16.mxu0 0
  %843 = vmatpush2.bf16.msra.mxu0 0
  %844 = vmatprep.subr.bf16.mxu0 0
  %845 = vmatpush2.bf16.msra.mxu0 0
  %846 = vmatprep.subr.bf16.mxu0 0
  %847 = vmatpush2.bf16.msra.mxu0 0
  %848 = vmatprep.subr.bf16.mxu0 0
  %849 = vmatpush2.bf16.msra.mxu0 0
  %850 = vmatprep.subr.bf16.mxu0 0
  %851 = vmatpush2.bf16.msra.mxu0 0
  %852 = vmatprep.mubr.bf16.mxu0 0
  %853 = vmatmul.mubr.bf16.gmra.mxu0 %v818
  %v854 = vpop.f32.mrf.mxu0
  %v855 = vadd.f32 0.0, %v854
  %v856 = vpop.f32.mrf.mxu0
  %v857 = vadd.f32 0.0, %v856
  %v858 = vpop.f32.mrf.mxu0
  %v859 = vadd.f32 0.0, %v858
  %v860 = vpop.f32.mrf.mxu0
  %v861 = vadd.f32 0.0, %v860
  %862 = vdwg.mxu0
  %v863 = vadd.f32 %v812, %v855
  %v864 = vadd.f32 %v813, %v857
  %v865 = vadd.f32 %v814, %v859
  %v866 = vadd.f32 %v815, %v861
  %v867 = vxor.u32 %v863, 2147483648
  %v868 = vxor.u32 %v864, 2147483648
  %v869 = vxor.u32 %v865, 2147483648
  %v870 = vxor.u32 %v866, 2147483648
  %v871 = vmul.f32 %v867, 1.442695
  %v872 = vpow.pop %v871
  %v873 = vmul.f32 %v868, 1.442695
  %v874 = vpow.pop %v873
  %v875 = vmul.f32 %v869, 1.442695
  %v876 = vpow.pop %v875
  %v877 = vmul.f32 %v870, 1.442695
  %v878 = vpow.pop %v877
  %v879 = vadd.f32 %v872, 1.0
  %v880 = vadd.f32 %v874, 1.0
  %v881 = vadd.f32 %v876, 1.0
  %v882 = vadd.f32 %v878, 1.0
  %v883 = vrcp.pop %v879
  %v884 = vmul.f32 1.0, %v883
  %v885 = vrcp.pop %v880
  %v886 = vmul.f32 1.0, %v885
  %v887 = vrcp.pop %v881
  %v888 = vmul.f32 1.0, %v887
  %v889 = vrcp.pop %v882
  %v890 = vmul.f32 1.0, %v889
  %v891 = vtanh.pop %v864
  %v892 = vtanh.pop %v866
  %v893 = vmul.f32 %v884, %v794
  %v894 = vmul.f32 %v888, %v795
  %897 = vrot.lane.b32.xlu0 %v891, 64
  %v898 = vpop.permute.xlu0 %897
  %899 = vrot.lane.b32.xlu0 %v892, 64
  %v900 = vpop.permute.xlu0 %899
  %v903 = vmul.f32 %v884, %v898
  %v904 = vmul.f32 %v888, %v900
  %907 = vrot.lane.b32.xlu0 %v903, 64
  %v908 = vpop.permute.xlu0 %907
  %909 = vrot.lane.b32.xlu0 %v904, 64
  %v910 = vpop.permute.xlu0 %909
  %v913 = vadd.f32 %v893, %v908
  %v914 = vadd.f32 %v894, %v910
  %v915 = vtanh.pop %v913
  %v916 = vtanh.pop %v914
  %919 = vrot.lane.b32.xlu0 %v915, 64
  %v920 = vpop.permute.xlu0 %919
  %921 = vrot.lane.b32.xlu0 %v916, 64
  %v922 = vpop.permute.xlu0 %921
  %v925 = vmul.f32 %v886, %v920
  %v926 = vmul.f32 %v890, %v922
  %vm927 = vcmp.eq.f32.partialorder %v31, 4.0
  %vm928 = vcmp.eq.f32.partialorder %v32, 4.0
  %v929 = vsel %vm927, %v925, %v810
  %v930 = vsel %vm928, %v926, %v811
  %v931 = vld [vmem:[#allocation2 + $0xa0] sm:$0xff]
  %v932 = vld [vmem:[#allocation2 + $0xa8] sm:$0xff]
  %v933 = vld [vmem:[#allocation2 + $0xb0] sm:$0xff]
  %v934 = vld [vmem:[#allocation2 + $0xb8] sm:$0xff]
  %v935 = vpack.c.bf16 %v926, %v925
  %v937 = vsel %vm102, %v935, 0
  %939 = vmatprep.subr.bf16.mxu0 0
  %940 = vmatpush1.bf16.msra.mxu0 0
  %941 = vmatprep.subr.bf16.mxu0 0
  %942 = vmatpush1.bf16.msra.mxu0 0
  %943 = vmatprep.subr.bf16.mxu0 0
  %944 = vmatpush1.bf16.msra.mxu0 0
  %945 = vmatprep.subr.bf16.mxu0 0
  %946 = vmatpush1.bf16.msra.mxu0 0
  %947 = vmatprep.subr.bf16.mxu0 %v80
  %948 = vmatpush1.bf16.msra.mxu0 %v79
  %949 = vmatprep.subr.bf16.mxu0 %v78
  %950 = vmatpush1.bf16.msra.mxu0 %v77
  %951 = vmatprep.subr.bf16.mxu0 %v76
  %952 = vmatpush1.bf16.msra.mxu0 %v75
  %953 = vmatprep.subr.bf16.mxu0 %v74
  %954 = vmatpush1.bf16.msra.mxu0 %v73
  %955 = vmatprep.subr.bf16.mxu0 0
  %956 = vmatpush2.bf16.msra.mxu0 0
  %957 = vmatprep.subr.bf16.mxu0 0
  %958 = vmatpush2.bf16.msra.mxu0 0
  %959 = vmatprep.subr.bf16.mxu0 0
  %960 = vmatpush2.bf16.msra.mxu0 0
  %961 = vmatprep.subr.bf16.mxu0 0
  %962 = vmatpush2.bf16.msra.mxu0 0
  %963 = vmatprep.subr.bf16.mxu0 0
  %964 = vmatpush2.bf16.msra.mxu0 0
  %965 = vmatprep.subr.bf16.mxu0 0
  %966 = vmatpush2.bf16.msra.mxu0 0
  %967 = vmatprep.subr.bf16.mxu0 0
  %968 = vmatpush2.bf16.msra.mxu0 0
  %969 = vmatprep.subr.bf16.mxu0 0
  %970 = vmatpush2.bf16.msra.mxu0 0
  %971 = vmatprep.mubr.bf16.mxu0 0
  %972 = vmatmul.mubr.bf16.gmra.mxu0 %v937
  %v973 = vpop.f32.mrf.mxu0
  %v974 = vadd.f32 0.0, %v973
  %v975 = vpop.f32.mrf.mxu0
  %v976 = vadd.f32 0.0, %v975
  %v977 = vpop.f32.mrf.mxu0
  %v978 = vadd.f32 0.0, %v977
  %v979 = vpop.f32.mrf.mxu0
  %v980 = vadd.f32 0.0, %v979
  %981 = vdwg.mxu0
  %v982 = vadd.f32 %v931, %v974
  %v983 = vadd.f32 %v932, %v976
  %v984 = vadd.f32 %v933, %v978
  %v985 = vadd.f32 %v934, %v980
  %v986 = vxor.u32 %v982, 2147483648
  %v987 = vxor.u32 %v983, 2147483648
  %v988 = vxor.u32 %v984, 2147483648
  %v989 = vxor.u32 %v985, 2147483648
  %v990 = vmul.f32 %v986, 1.442695
  %v991 = vpow.pop %v990
  %v992 = vmul.f32 %v987, 1.442695
  %v993 = vpow.pop %v992
  %v994 = vmul.f32 %v988, 1.442695
  %v995 = vpow.pop %v994
  %v996 = vmul.f32 %v989, 1.442695
  %v997 = vpow.pop %v996
  %v998 = vadd.f32 %v991, 1.0
  %v999 = vadd.f32 %v993, 1.0
  %v1000 = vadd.f32 %v995, 1.0
  %v1001 = vadd.f32 %v997, 1.0
  %v1002 = vrcp.pop %v998
  %v1003 = vmul.f32 1.0, %v1002
  %v1004 = vrcp.pop %v999
  %v1005 = vmul.f32 1.0, %v1004
  %v1006 = vrcp.pop %v1000
  %v1007 = vmul.f32 1.0, %v1006
  %v1008 = vrcp.pop %v1001
  %v1009 = vmul.f32 1.0, %v1008
  %v1010 = vtanh.pop %v983
  %v1011 = vtanh.pop %v985
  %v1012 = vmul.f32 %v1003, %v913
  %v1013 = vmul.f32 %v1007, %v914
  %1016 = vrot.lane.b32.xlu0 %v1010, 64
  %v1017 = vpop.permute.xlu0 %1016
  %1018 = vrot.lane.b32.xlu0 %v1011, 64
  %v1019 = vpop.permute.xlu0 %1018
  %v1022 = vmul.f32 %v1003, %v1017
  %v1023 = vmul.f32 %v1007, %v1019
  %1026 = vrot.lane.b32.xlu0 %v1022, 64
  %v1027 = vpop.permute.xlu0 %1026
  %1028 = vrot.lane.b32.xlu0 %v1023, 64
  %v1029 = vpop.permute.xlu0 %1028
  %v1032 = vadd.f32 %v1012, %v1027
  %v1033 = vadd.f32 %v1013, %v1029
  %v1034 = vtanh.pop %v1032
  %v1035 = vtanh.pop %v1033
  %1038 = vrot.lane.b32.xlu0 %v1034, 64
  %v1039 = vpop.permute.xlu0 %1038
  %1040 = vrot.lane.b32.xlu0 %v1035, 64
  %v1041 = vpop.permute.xlu0 %1040
  %v1044 = vmul.f32 %v1005, %v1039
  %v1045 = vmul.f32 %v1009, %v1041
  %vm1046 = vcmp.eq.f32.partialorder %v31, 5.0
  %vm1047 = vcmp.eq.f32.partialorder %v32, 5.0
  %v1048 = vsel %vm1046, %v1044, %v929
  %v1049 = vsel %vm1047, %v1045, %v930
  %v1050 = vld [vmem:[#allocation2 + $0xc0] sm:$0xff]
  %v1051 = vld [vmem:[#allocation2 + $0xc8] sm:$0xff]
  %v1052 = vld [vmem:[#allocation2 + $0xd0] sm:$0xff]
  %v1053 = vld [vmem:[#allocation2 + $0xd8] sm:$0xff]
  %v1054 = vpack.c.bf16 %v1045, %v1044
  %v1056 = vsel %vm102, %v1054, 0
  %1058 = vmatprep.subr.bf16.mxu0 0
  %1059 = vmatpush1.bf16.msra.mxu0 0
  %1060 = vmatprep.subr.bf16.mxu0 0
  %1061 = vmatpush1.bf16.msra.mxu0 0
  %1062 = vmatprep.subr.bf16.mxu0 0
  %1063 = vmatpush1.bf16.msra.mxu0 0
  %1064 = vmatprep.subr.bf16.mxu0 0
  %1065 = vmatpush1.bf16.msra.mxu0 0
  %1066 = vmatprep.subr.bf16.mxu0 %v80
  %1067 = vmatpush1.bf16.msra.mxu0 %v79
  %1068 = vmatprep.subr.bf16.mxu0 %v78
  %1069 = vmatpush1.bf16.msra.mxu0 %v77
  %1070 = vmatprep.subr.bf16.mxu0 %v76
  %1071 = vmatpush1.bf16.msra.mxu0 %v75
  %1072 = vmatprep.subr.bf16.mxu0 %v74
  %1073 = vmatpush1.bf16.msra.mxu0 %v73
  %1074 = vmatprep.subr.bf16.mxu0 0
  %1075 = vmatpush2.bf16.msra.mxu0 0
  %1076 = vmatprep.subr.bf16.mxu0 0
  %1077 = vmatpush2.bf16.msra.mxu0 0
  %1078 = vmatprep.subr.bf16.mxu0 0
  %1079 = vmatpush2.bf16.msra.mxu0 0
  %1080 = vmatprep.subr.bf16.mxu0 0
  %1081 = vmatpush2.bf16.msra.mxu0 0
  %1082 = vmatprep.subr.bf16.mxu0 0
  %1083 = vmatpush2.bf16.msra.mxu0 0
  %1084 = vmatprep.subr.bf16.mxu0 0
  %1085 = vmatpush2.bf16.msra.mxu0 0
  %1086 = vmatprep.subr.bf16.mxu0 0
  %1087 = vmatpush2.bf16.msra.mxu0 0
  %1088 = vmatprep.subr.bf16.mxu0 0
  %1089 = vmatpush2.bf16.msra.mxu0 0
  %1090 = vmatprep.mubr.bf16.mxu0 0
  %1091 = vmatmul.mubr.bf16.gmra.mxu0 %v1056
  %v1092 = vpop.f32.mrf.mxu0
  %v1093 = vadd.f32 0.0, %v1092
  %v1094 = vpop.f32.mrf.mxu0
  %v1095 = vadd.f32 0.0, %v1094
  %v1096 = vpop.f32.mrf.mxu0
  %v1097 = vadd.f32 0.0, %v1096
  %v1098 = vpop.f32.mrf.mxu0
  %v1099 = vadd.f32 0.0, %v1098
  %1100 = vdwg.mxu0
  %v1101 = vadd.f32 %v1050, %v1093
  %v1102 = vadd.f32 %v1051, %v1095
  %v1103 = vadd.f32 %v1052, %v1097
  %v1104 = vadd.f32 %v1053, %v1099
  %v1105 = vxor.u32 %v1101, 2147483648
  %v1106 = vxor.u32 %v1102, 2147483648
  %v1107 = vxor.u32 %v1103, 2147483648
  %v1108 = vxor.u32 %v1104, 2147483648
  %v1109 = vmul.f32 %v1105, 1.442695
  %v1110 = vpow.pop %v1109
  %v1111 = vmul.f32 %v1106, 1.442695
  %v1112 = vpow.pop %v1111
  %v1113 = vmul.f32 %v1107, 1.442695
  %v1114 = vpow.pop %v1113
  %v1115 = vmul.f32 %v1108, 1.442695
  %v1116 = vpow.pop %v1115
  %v1117 = vadd.f32 %v1110, 1.0
  %v1118 = vadd.f32 %v1112, 1.0
  %v1119 = vadd.f32 %v1114, 1.0
  %v1120 = vadd.f32 %v1116, 1.0
  %v1121 = vrcp.pop %v1117
  %v1122 = vmul.f32 1.0, %v1121
  %v1123 = vrcp.pop %v1118
  %v1124 = vmul.f32 1.0, %v1123
  %v1125 = vrcp.pop %v1119
  %v1126 = vmul.f32 1.0, %v1125
  %v1127 = vrcp.pop %v1120
  %v1128 = vmul.f32 1.0, %v1127
  %v1129 = vtanh.pop %v1102
  %v1130 = vtanh.pop %v1104
  %v1131 = vmul.f32 %v1122, %v1032
  %v1132 = vmul.f32 %v1126, %v1033
  %1135 = vrot.lane.b32.xlu0 %v1129, 64
  %v1136 = vpop.permute.xlu0 %1135
  %1137 = vrot.lane.b32.xlu0 %v1130, 64
  %v1138 = vpop.permute.xlu0 %1137
  %v1141 = vmul.f32 %v1122, %v1136
  %v1142 = vmul.f32 %v1126, %v1138
  %1145 = vrot.lane.b32.xlu0 %v1141, 64
  %v1146 = vpop.permute.xlu0 %1145
  %1147 = vrot.lane.b32.xlu0 %v1142, 64
  %v1148 = vpop.permute.xlu0 %1147
  %v1151 = vadd.f32 %v1131, %v1146
  %v1152 = vadd.f32 %v1132, %v1148
  %v1153 = vtanh.pop %v1151
  %v1154 = vtanh.pop %v1152
  %1157 = vrot.lane.b32.xlu0 %v1153, 64
  %v1158 = vpop.permute.xlu0 %1157
  %1159 = vrot.lane.b32.xlu0 %v1154, 64
  %v1160 = vpop.permute.xlu0 %1159
  %v1163 = vmul.f32 %v1124, %v1158
  %v1164 = vmul.f32 %v1128, %v1160
  %vm1165 = vcmp.eq.f32.partialorder %v31, 6.0
  %vm1166 = vcmp.eq.f32.partialorder %v32, 6.0
  %v1167 = vsel %vm1165, %v1163, %v1048
  %v1168 = vsel %vm1166, %v1164, %v1049
  %v1169 = vld [vmem:[#allocation2 + $0xe0] sm:$0xff]
  %v1170 = vld [vmem:[#allocation2 + $0xe8] sm:$0xff]
  %v1171 = vld [vmem:[#allocation2 + $0xf0] sm:$0xff]
  %v1172 = vld [vmem:[#allocation2 + $0xf8] sm:$0xff]
  %v1173 = vpack.c.bf16 %v1164, %v1163
  %v1175 = vsel %vm102, %v1173, 0
  %1177 = vmatprep.subr.bf16.mxu0 0
  %1178 = vmatpush1.bf16.msra.mxu0 0
  %1179 = vmatprep.subr.bf16.mxu0 0
  %1180 = vmatpush1.bf16.msra.mxu0 0
  %1181 = vmatprep.subr.bf16.mxu0 0
  %1182 = vmatpush1.bf16.msra.mxu0 0
  %1183 = vmatprep.subr.bf16.mxu0 0
  %1184 = vmatpush1.bf16.msra.mxu0 0
  %1185 = vmatprep.subr.bf16.mxu0 %v80
  %1186 = vmatpush1.bf16.msra.mxu0 %v79
  %1187 = vmatprep.subr.bf16.mxu0 %v78
  %1188 = vmatpush1.bf16.msra.mxu0 %v77
  %1189 = vmatprep.subr.bf16.mxu0 %v76
  %1190 = vmatpush1.bf16.msra.mxu0 %v75
  %1191 = vmatprep.subr.bf16.mxu0 %v74
  %1192 = vmatpush1.bf16.msra.mxu0 %v73
  %1193 = vmatprep.subr.bf16.mxu0 0
  %1194 = vmatpush2.bf16.msra.mxu0 0
  %1195 = vmatprep.subr.bf16.mxu0 0
  %1196 = vmatpush2.bf16.msra.mxu0 0
  %1197 = vmatprep.subr.bf16.mxu0 0
  %1198 = vmatpush2.bf16.msra.mxu0 0
  %1199 = vmatprep.subr.bf16.mxu0 0
  %1200 = vmatpush2.bf16.msra.mxu0 0
  %1201 = vmatprep.subr.bf16.mxu0 0
  %1202 = vmatpush2.bf16.msra.mxu0 0
  %1203 = vmatprep.subr.bf16.mxu0 0
  %1204 = vmatpush2.bf16.msra.mxu0 0
  %1205 = vmatprep.subr.bf16.mxu0 0
  %1206 = vmatpush2.bf16.msra.mxu0 0
  %1207 = vmatprep.subr.bf16.mxu0 0
  %1208 = vmatpush2.bf16.msra.mxu0 0
  %1209 = vmatprep.mubr.bf16.mxu0 0
  %1210 = vmatmul.mubr.bf16.gmra.mxu0 %v1175
  %v1211 = vpop.f32.mrf.mxu0
  %v1212 = vadd.f32 0.0, %v1211
  %v1213 = vpop.f32.mrf.mxu0
  %v1214 = vadd.f32 0.0, %v1213
  %v1215 = vpop.f32.mrf.mxu0
  %v1216 = vadd.f32 0.0, %v1215
  %v1217 = vpop.f32.mrf.mxu0
  %v1218 = vadd.f32 0.0, %v1217
  %1219 = vdwg.mxu0
  %v1220 = vadd.f32 %v1169, %v1212
  %v1221 = vadd.f32 %v1170, %v1214
  %v1222 = vadd.f32 %v1171, %v1216
  %v1223 = vadd.f32 %v1172, %v1218
  %v1224 = vxor.u32 %v1220, 2147483648
  %v1225 = vxor.u32 %v1221, 2147483648
  %v1226 = vxor.u32 %v1222, 2147483648
  %v1227 = vxor.u32 %v1223, 2147483648
  %v1228 = vmul.f32 %v1224, 1.442695
  %v1229 = vpow.pop %v1228
  %v1230 = vmul.f32 %v1225, 1.442695
  %v1231 = vpow.pop %v1230
  %v1232 = vmul.f32 %v1226, 1.442695
  %v1233 = vpow.pop %v1232
  %v1234 = vmul.f32 %v1227, 1.442695
  %v1235 = vpow.pop %v1234
  %v1236 = vadd.f32 %v1229, 1.0
  %v1237 = vadd.f32 %v1231, 1.0
  %v1238 = vadd.f32 %v1233, 1.0
  %v1239 = vadd.f32 %v1235, 1.0
  %v1240 = vrcp.pop %v1236
  %v1241 = vmul.f32 1.0, %v1240
  %v1242 = vrcp.pop %v1237
  %v1243 = vmul.f32 1.0, %v1242
  %v1244 = vrcp.pop %v1238
  %v1245 = vmul.f32 1.0, %v1244
  %v1246 = vrcp.pop %v1239
  %v1247 = vmul.f32 1.0, %v1246
  %v1248 = vtanh.pop %v1221
  %v1249 = vtanh.pop %v1223
  %v1250 = vmul.f32 %v1241, %v1151
  %v1251 = vmul.f32 %v1245, %v1152
  %1254 = vrot.lane.b32.xlu0 %v1248, 64
  %v1255 = vpop.permute.xlu0 %1254
  %1256 = vrot.lane.b32.xlu0 %v1249, 64
  %v1257 = vpop.permute.xlu0 %1256
  %v1260 = vmul.f32 %v1241, %v1255
  %v1261 = vmul.f32 %v1245, %v1257
  %1264 = vrot.lane.b32.xlu0 %v1260, 64
  %v1265 = vpop.permute.xlu0 %1264
  %1266 = vrot.lane.b32.xlu0 %v1261, 64
  %v1267 = vpop.permute.xlu0 %1266
  %v1270 = vadd.f32 %v1250, %v1265
  %v1271 = vadd.f32 %v1251, %v1267
  %v1272 = vtanh.pop %v1270
  %v1273 = vtanh.pop %v1271
  %1276 = vrot.lane.b32.xlu0 %v1272, 64
  %v1277 = vpop.permute.xlu0 %1276
  %1278 = vrot.lane.b32.xlu0 %v1273, 64
  %v1279 = vpop.permute.xlu0 %1278
  %v1282 = vmul.f32 %v1243, %v1277
  %v1283 = vmul.f32 %v1247, %v1279
  %vm1284 = vcmp.eq.f32.partialorder %v31, 7.0
  %vm1285 = vcmp.eq.f32.partialorder %v32, 7.0
  %v1286 = vsel %vm1284, %v1282, %v1167
  %v1287 = vsel %vm1285, %v1283, %v1168
  %v1288 = vld [vmem:[%s2] sm:$0xff]
  %v1289 = vld [vmem:[%s2 + $0x8] sm:$0xff]
  %v1290 = vld [vmem:[%s2 + $0x10] sm:$0xff]
  %v1291 = vld [vmem:[%s2 + $0x18] sm:$0xff]
  %v1292 = vpack.c.bf16 %v1289, %v1288
  %v1293 = vpack.c.bf16 %v1291, %v1290
  %v1294 = vld [vmem:[%s2 + $0x20] sm:$0x1]
  %v1295 = vld [vmem:[%s2 + $0x21] sm:$0x1]
  %v1296 = vpack.c.bf16 %v1287, %v1287
  %vm1297 = vcmask 261120
  %v1299 = vsel %vm1297, %v1296, 0
  %1301 = vmatprep.subr.bf16.mxu0 0
  %1302 = vmatpush1.bf16.msra.mxu0 0
  %1303 = vmatprep.subr.bf16.mxu0 0
  %1304 = vmatpush1.bf16.msra.mxu0 0
  %1305 = vmatprep.subr.bf16.mxu0 0
  %1306 = vmatpush1.bf16.msra.mxu0 0
  %1307 = vmatprep.subr.bf16.mxu0 0
  %1308 = vmatpush1.bf16.msra.mxu0 0
  %1309 = vmatprep.subr.bf16.mxu0 0
  %1310 = vmatpush1.bf16.msra.mxu0 0
  %1311 = vmatprep.subr.bf16.mxu0 0
  %1312 = vmatpush1.bf16.msra.mxu0 0
  %1313 = vmatprep.subr.bf16.mxu0 0
  %1314 = vmatpush1.bf16.msra.mxu0 %v1293
  %1315 = vmatprep.subr.bf16.mxu0 0
  %1316 = vmatpush1.bf16.msra.mxu0 %v1292
  %1317 = vmatprep.subr.bf16.mxu0 0
  %1318 = vmatpush2.bf16.msra.mxu0 0
  %1319 = vmatprep.subr.bf16.mxu0 0
  %1320 = vmatpush2.bf16.msra.mxu0 0
  %1321 = vmatprep.subr.bf16.mxu0 0
  %1322 = vmatpush2.bf16.msra.mxu0 0
  %1323 = vmatprep.subr.bf16.mxu0 0
  %1324 = vmatpush2.bf16.msra.mxu0 0
  %1325 = vmatprep.subr.bf16.mxu0 0
  %1326 = vmatpush2.bf16.msra.mxu0 0
  %1327 = vmatprep.subr.bf16.mxu0 0
  %1328 = vmatpush2.bf16.msra.mxu0 0
  %1329 = vmatprep.subr.bf16.mxu0 0
  %1330 = vmatpush2.bf16.msra.mxu0 0
  %1331 = vmatprep.subr.bf16.mxu0 0
  %1332 = vmatpush2.bf16.msra.mxu0 0
  %1333 = vmatprep.mubr.bf16.mxu0 0
  %1334 = vmatmul.mubr.bf16.gmra.mxu0 %v1299
  %v1335 = vpop.f32.mrf.mxu0
  %v1336 = vadd.f32 %v1294, %v1335
  %v1337 = vpop.f32.mrf.mxu0
  %v1338 = vpop.f32.mrf.mxu0
  %v1339 = vpop.f32.mrf.mxu0
  %1340 = vdwg.mxu0
  %v1341 = vxor.u32 %v1336, 2147483648
  %v1342 = vmul.f32 %v1341, 1.442695
  %v1343 = vpow.pop %v1342
  %v1344 = vadd.f32 %v1343, 1.0
  %v1345 = vrcp.pop %v1344
  %v1346 = vmul.f32 1.0, %v1345
  %v1347 = vtanh.pop %v1336
  %1349 = vrot.lane.b32.xlu0 %v1295, 32
  %v1350 = vpop.permute.xlu0 %1349
  %v1352 = vmul.f32 %v1346, %v1350
  %1354 = vrot.lane.b32.xlu0 %v1347, 64
  %v1355 = vpop.permute.xlu0 %1354
  %v1357 = vmul.f32 %v1346, %v1355
  %1359 = vrot.lane.b32.xlu0 %v1357, 32
  %v1360 = vpop.permute.xlu0 %1359
  %v1362 = vadd.f32 %v1352, %v1360
  %v1363 = vtanh.pop %v1362
  %1365 = vrot.lane.b32.xlu0 %v1363, 64
  %v1366 = vpop.permute.xlu0 %1365
  %v1368 = vmul.f32 %v1346, %v1366
  %v1369 = vpack.c.bf16 %v1368, %v1368
  %v1370 = vpack.c.bf16 %v1286, %v1286
  %1372 = vrot.lane.b32.xlu0 %v1369, 32
  %v1373 = vpop.permute.xlu0 %1372
  %1375 = vrot.lane.b32.xlu0 %v1370, 96
  %v1376 = vpop.permute.xlu0 %1375
  %v1378 = vsel %vm1297, %v1373, 0
  %v1381 = vsel %vm1297, %v1376, 0
  %1383 = vmatprep.subr.bf16.mxu0 0
  %1384 = vmatpush1.bf16.xpose.msra.mxu0 0
  %1385 = vmatprep.subr.bf16.mxu0 0
  %1386 = vmatpush1.bf16.xpose.msra.mxu0 0
  %1387 = vmatprep.subr.bf16.mxu0 0
  %1388 = vmatpush1.bf16.xpose.msra.mxu0 0
  %1389 = vmatprep.subr.bf16.mxu0 0
  %1390 = vmatpush1.bf16.xpose.msra.mxu0 0
  %1391 = vmatprep.subr.bf16.mxu0 0
  %1392 = vmatpush1.bf16.xpose.msra.mxu0 0
  %1393 = vmatprep.subr.bf16.mxu0 0
  %1394 = vmatpush1.bf16.xpose.msra.mxu0 0
  %1395 = vmatprep.subr.bf16.mxu0 0
  %1396 = vmatpush1.bf16.xpose.msra.mxu0 0
  %1397 = vmatprep.subr.bf16.mxu0 0
  %1398 = vmatpush1.bf16.xpose.msra.mxu0 %v1381
  %1399 = vmatprep.subr.bf16.mxu0 0
  %1400 = vmatpush2.bf16.xpose.msra.mxu0 0
  %1401 = vmatprep.subr.bf16.mxu0 0
  %1402 = vmatpush2.bf16.xpose.msra.mxu0 0
  %1403 = vmatprep.subr.bf16.mxu0 0
  %1404 = vmatpush2.bf16.xpose.msra.mxu0 0
  %1405 = vmatprep.subr.bf16.mxu0 0
  %1406 = vmatpush2.bf16.xpose.msra.mxu0 0
  %1407 = vmatprep.subr.bf16.mxu0 0
  %1408 = vmatpush2.bf16.xpose.msra.mxu0 0
  %1409 = vmatprep.subr.bf16.mxu0 0
  %1410 = vmatpush2.bf16.xpose.msra.mxu0 0
  %1411 = vmatprep.subr.bf16.mxu0 0
  %1412 = vmatpush2.bf16.xpose.msra.mxu0 0
  %1413 = vmatprep.subr.bf16.mxu0 0
  %1414 = vmatpush2.bf16.xpose.msra.mxu0 0
  %1415 = vmatprep.mubr.bf16.mxu0 0
  %1416 = vmatmul.mubr.bf16.gmra.mxu0 %v1378
  %v1417 = vpop.f32.mrf.mxu0
  %v1418 = vadd.f32 0.0, %v1417
  %v1419 = vpop.f32.mrf.mxu0
  %v1420 = vpop.f32.mrf.mxu0
  %v1421 = vpop.f32.mrf.mxu0
  %1422 = vdwg.mxu0
  %v1423 = vld [vmem:[%s2 + $0x22] sm:$0x1]
  %v1424 = vld [vmem:[%s2 + $0x23] sm:$0x1]
  %v1425 = vmul.f32 %v1418, %v1424
  %v1426 = vadd.f32 %v1423, %v1425
  %1427 = vst [vmem:[%s3] sm:$0xff] 0.0
  %vm1428 = vcmask 24576
  %1429 = vst.msk [vmem:[%s3] sm:$0x1] %vm1428, %v1426
  %1431 = vrot.lane.b32.xlu0 %v1368, 32
  %v1432 = vpop.permute.xlu0 %1431
  %vm1434 = vcmask 253952
  %1435 = vst.msk [vmem:[%s3 + $0x1] sm:$0x1] %vm1434, %v1432
  %1437 = vrot.lane.b32.xlu0 %v1362, 96
  %v1438 = vpop.permute.xlu0 %1437
  %1440 = vst.msk [vmem:[%s3 + $0x2] sm:$0x1] %vm1434, %v1438
  %1442 = vrot.lane.b32.xlu0 %v1286, 96
  %v1443 = vpop.permute.xlu0 %1442
  %vm1445 = vcmask 261124
  %1446 = vst.msk [vmem:[%s3] sm:$0xf0] %vm1445, %v1443
  // Predicated region
  $region14: #{simple_recurrent_ranker_forward.1} parent=0 // pred_check
    _
  $region15: #{simple_recurrent_ranker_forward.1} parent=0 // pred_check_branch
    %1448 = sbr.rel (0) target = $region17
  $region16: #{simple_recurrent_ranker_forward.1} parent=0 // pred_region
    _
  $region17: #{simple_recurrent_ranker_forward.1} parent=0 // pred_fallthru
    _
  // Predicated region
  $region18: #{simple_recurrent_ranker_forward.1} parent=0 // pred_check
    _
  $region19: #{simple_recurrent_ranker_forward.1} parent=0 // pred_check_branch
    %1450 = sbr.rel (0) target = $region21
  $region20: #{simple_recurrent_ranker_forward.1} parent=0 // pred_region
    _
  $region21: #{simple_recurrent_ranker_forward.1} parent=0 // pred_fallthru
    _

</llo_original>
